<compile_context>
chip_gen: v6e
topology: v6e:2x2x1
jax: 0.10.0
libtpu: 0.0.40
codegen_flags: <defaults>
</compile_context>

<pallas_src>
import math
import functools

import jax
import jax.numpy as jnp
from jax.experimental import pallas as pl
from jax.experimental.pallas import tpu as pltpu


# ------------------------------- fused kernel -------------------------------

def _upblock_kernel(xs_ref, skip_ref, tcb_ref,
                    wup_ref, bup_ref,
                    wres_ref, bres_ref,
                    g1_ref, bt1_ref,
                    wc1_ref, bc1_ref,
                    g2_ref, bt2_ref,
                    wc2_ref, bc2_ref,
                    o_ref,
                    *, groups, eps):
    f32 = jnp.float32
    bf16 = jnp.bfloat16
    Lout, _ = xs_ref.shape
    Cmid = bup_ref.shape[-1]
    Cout = o_ref.shape[-1]

    xs = xs_ref[...]                      # (Lout, Cin) bf16 ; row o holds x[o // 2]
    skip = skip_ref[...]                  # (Lout, Cskip) f32

    # ---- ConvTranspose1d(Cin -> Cmid, k=4, stride=2, pad=1), polyphase, no scatter matmuls ----
    # Tap j of input i lands at output o = 2*i - 1 + j, so
    #   even o: x[o/2] @ W1     + x[o/2 - 1] @ W3  ==  xs[o] @ W1 + xs[o-2] @ W3
    #   odd  o: x[(o-1)/2] @ W2 + x[(o+1)/2] @ W0  ==  xs[o] @ W2 + xs[o+1] @ W0
    t0 = jnp.dot(xs, wup_ref[0], preferred_element_type=f32)
    t1 = jnp.dot(xs, wup_ref[1], preferred_element_type=f32)
    t2 = jnp.dot(xs, wup_ref[2], preferred_element_type=f32)
    t3 = jnp.dot(xs, wup_ref[3], preferred_element_type=f32)
    row_m = jax.lax.broadcasted_iota(jnp.int32, (Lout, Cmid), 0)
    even = (row_m & 1) == 0
    prev2 = jnp.where(row_m >= 2, pltpu.roll(t3, 2, axis=0), 0.0)                 # t3[o-2]
    next1 = jnp.where(row_m <= Lout - 2, pltpu.roll(t0, Lout - 1, axis=0), 0.0)   # t0[o+1]
    up = jnp.where(even, t1 + prev2, t2 + next1) + bup_ref[...]                   # (Lout, Cmid)
    # TODO(synk): F.interpolate('linear') length-fixup branch not implemented — with
    #             k=4, s=2, p=1 the upsampled length is always exactly 2*L here.

    # ---- channel concat [up | skip] materialized once (lane concat), reused downstream ----
    cat = jnp.concatenate([up, skip], axis=-1)                                    # (Lout, Ccat) f32

    # ---- residual = Conv1d(Ccat -> Cout, k=1): one K=Ccat matmul ----
    residual = (jnp.dot(cat.astype(bf16), wres_ref[...], preferred_element_type=f32)
                + bres_ref[...])

    # ---- GroupNorm + SiLU (one-hot group matrices built in-kernel from iota; f32 stats) ----
    def group_norm_silu(v, gamma, beta):
        C = v.shape[-1]
        Cg = C // groups
        n = float(Lout * Cg)
        ch_cg = jax.lax.broadcasted_iota(jnp.int32, (C, groups), 0)
        gr_cg = jax.lax.broadcasted_iota(jnp.int32, (C, groups), 1)
        cg = ((ch_cg >= gr_cg * Cg) & (ch_cg < (gr_cg + 1) * Cg)).astype(f32)     # (C, G)
        ch_gc = jax.lax.broadcasted_iota(jnp.int32, (groups, C), 1)
        gr_gc = jax.lax.broadcasted_iota(jnp.int32, (groups, C), 0)
        gc = ((ch_gc >= gr_gc * Cg) & (ch_gc < (gr_gc + 1) * Cg)).astype(f32)     # (G, C)
        mean_g = jnp.dot(jnp.sum(v, axis=0, keepdims=True), cg,
                         preferred_element_type=f32) / n                          # (1, G)
        d = v - jnp.dot(mean_g, gc, preferred_element_type=f32)
        var_g = jnp.dot(jnp.sum(d * d, axis=0, keepdims=True), cg,
                        preferred_element_type=f32) / n
        inv_g = jax.lax.rsqrt(var_g + eps)
        y = d * jnp.dot(inv_g, gc, preferred_element_type=f32) * gamma + beta
        return y * jax.nn.sigmoid(y)

    # ---- Conv1d(k=3, pad=1): 3 tap matmuls, row shifts via pltpu.roll + boundary mask ----
    row_o = jax.lax.broadcasted_iota(jnp.int32, (Lout, Cout), 0)

    def conv3(h, w_ref):
        hb = h.astype(bf16)
        p0 = jnp.dot(hb, w_ref[0], preferred_element_type=f32)
        p1 = jnp.dot(hb, w_ref[1], preferred_element_type=f32)
        p2 = jnp.dot(hb, w_ref[2], preferred_element_type=f32)
        left = jnp.where(row_o >= 1, pltpu.roll(p0, 1, axis=0), 0.0)              # p0[l-1]
        right = jnp.where(row_o <= Lout - 2, pltpu.roll(p2, Lout - 1, axis=0), 0.0)  # p2[l+1]
        return left + p1 + right

    h1 = group_norm_silu(cat, g1_ref[...], bt1_ref[...])
    h2 = conv3(h1, wc1_ref) + bc1_ref[...] + tcb_ref[...]      # + hoisted time/cond bias
    h3 = group_norm_silu(h2, g2_ref[...], bt2_ref[...])
    out = conv3(h3, wc2_ref) + bc2_ref[...] + residual
    o_ref[...] = out.astype(o_ref.dtype)


# ------------------------------- host wrapper -------------------------------

def upblock_forward(params, x, skip, t_emb, c_emb, *, groups=8, eps=1e-5):
    """UpBlock forward.  x:(B,L,Cin), skip:(B,2L,Cskip), t_emb:(B,Td), c_emb:(B,Cd); channels-last."""
    B, L, Cin = x.shape
    _, Lskip, Cskip = skip.shape
    Lout = 2 * L
    assert Lskip == Lout  # TODO(synk): F.interpolate path for mismatched lengths not implemented.
    Cmid = Cin // 2
    Ccat = Cmid + Cskip
    Cout = params['b_c2'].shape[-1]

    f32 = jnp.float32
    silu = lambda a: a * jax.nn.sigmoid(a)

    # Hoisted time/condition MLPs: fold SiLU+Linear into one per-batch (1, Cout) bias in XLA
    # (inside the kernel they were M=1 matvecs with near-zero MXU utilization).
    tcb = (jnp.dot(silu(t_emb.astype(f32)), params['w_t'].astype(f32)) + params['b_t']
           + jnp.dot(silu(c_emb.astype(f32)), params['w_c'].astype(f32)) + params['b_c'])
    tcb = tcb[:, None, :].astype(f32)                           # (B, 1, Cout)

    # Row-repeated bf16 input: xs[b, o] = x[b, o // 2].  Lets the in-kernel polyphase transposed
    # conv use only rolls + parity selects (no scatter matmuls) and halves the x DMA bytes.
    xs = jnp.repeat(x, 2, axis=1).astype(jnp.bfloat16)          # (B, Lout, Cin)

    bcast = lambda b: (b, 0, 0)
    full2 = lambda b: (0, 0)
    full3 = lambda b: (0, 0, 0)

    in_specs = [
        pl.BlockSpec((None, Lout, Cin), bcast),                 # xs (bf16)
        pl.BlockSpec((None, Lout, Cskip), bcast),               # skip (f32)
        pl.BlockSpec((None, 1, Cout), bcast),                   # hoisted time+cond bias
        pl.BlockSpec((4, Cin, Cmid), full3),                    # w_up (per tap)
        pl.BlockSpec((1, Cmid), full2),                         # b_up
        pl.BlockSpec((Ccat, Cout), full2),                      # w_res
        pl.BlockSpec((1, Cout), full2),                         # b_res
        pl.BlockSpec((1, Ccat), full2),                         # gamma1
        pl.BlockSpec((1, Ccat), full2),                         # beta1
        pl.BlockSpec((3, Ccat, Cout), full3),                   # w_conv1 (per tap)
        pl.BlockSpec((1, Cout), full2),                         # b_conv1
        pl.BlockSpec((1, Cout), full2),                         # gamma2
        pl.BlockSpec((1, Cout), full2),                         # beta2
        pl.BlockSpec((3, Cout, Cout), full3),                   # w_conv2 (per tap)
        pl.BlockSpec((1, Cout), full2),                         # b_conv2
    ]

    kern = functools.partial(_upblock_kernel, groups=groups, eps=eps)
    return pl.pallas_call(
        kern,
        out_shape=jax.ShapeDtypeStruct((B, Lout, Cout), jnp.float32),
        grid=(B,),
        in_specs=in_specs,
        out_specs=pl.BlockSpec((None, Lout, Cout), bcast),
        compiler_params=pltpu.CompilerParams(
            dimension_semantics=("parallel",),
            vmem_limit_bytes=32 * 1024 * 1024),
    )(xs, skip, tcb,
      params['w_up'], params['b_up'],
      params['w_res'], params['b_res'],
      params['g1'], params['bt1'],
      params['w_c1'], params['b_c1'],
      params['g2'], params['bt2'],
      params['w_c2'], params['b_c2'])


# ------------------------------ parameter init ------------------------------

def init_upblock_params(key, in_channels, out_channels, time_dim, cond_dim,
                        *, mxu_dtype=jnp.bfloat16):
    Cin, Cout = in_channels, out_channels
    Cmid = Cin // 2
    Ccat = Cin + Cmid
    ks = iter(jax.random.split(key, 16))

    def unif(shape, fan_in):
        bound = 1.0 / math.sqrt(fan_in)
        return jax.random.uniform(next(ks), shape, jnp.float32, -bound, bound)

    kg = jax.random.split(next(ks), 4)
    g1 = 1.0 + 0.1 * jax.random.normal(kg[0], (1, Ccat), jnp.float32)
    bt1 = 0.1 * jax.random.normal(kg[1], (1, Ccat), jnp.float32)
    g2 = 1.0 + 0.1 * jax.random.normal(kg[2], (1, Cout), jnp.float32)
    bt2 = 0.1 * jax.random.normal(kg[3], (1, Cout), jnp.float32)

    return {
        # ConvTranspose1d(Cin, Cmid, 4, stride=2, padding=1): tap j == PyTorch weight[:, :, j]
        # (transposed-conv convention o = 2*i - 1 + j; re-verify when importing real weights).
        'w_up': unif((4, Cin, Cmid), 4 * Cmid).astype(mxu_dtype),
        'b_up': unif((1, Cmid), 4 * Cmid),
        # residual 1x1 conv on the concat
        'w_res': unif((Ccat, Cout), Ccat).astype(mxu_dtype),
        'b_res': unif((1, Cout), Ccat),
        # GroupNorm(8, Ccat)
        'g1': g1, 'bt1': bt1,
        # Conv1d(Ccat, Cout, 3, padding=1): per-tap (K, N)
        'w_c1': unif((3, Ccat, Cout), 3 * Ccat).astype(mxu_dtype),
        'b_c1': unif((1, Cout), 3 * Ccat),
        # time / condition MLPs: Sequential(SiLU, Linear(d, Cout)) — consumed by the wrapper
        'w_t': unif((time_dim, Cout), time_dim),
        'b_t': unif((1, Cout), time_dim),
        'w_c': unif((cond_dim, Cout), cond_dim),
        'b_c': unif((1, Cout), cond_dim),
        # GroupNorm(8, Cout)
        'g2': g2, 'bt2': bt2,
        # Conv1d(Cout, Cout, 3, padding=1)
        'w_c2': unif((3, Cout, Cout), 3 * Cout).astype(mxu_dtype),
        'b_c2': unif((1, Cout), 3 * Cout),
    }


# ------------------------- pure-JAX reference (check) -------------------------

def upblock_reference(params, x, skip, t_emb, c_emb, *, groups=8, eps=1e-5):
    """Naive formulation (zero-dilated transposed conv, explicit concat, padded convs)."""
    f32 = jnp.float32
    bf = lambda a: a.astype(jnp.bfloat16).astype(f32)   # mirror the kernel's MXU-operand rounding
    silu = lambda a: a * jax.nn.sigmoid(a)

    B, L, Cin = x.shape
    Lout = 2 * L
    Cmid = Cin // 2

    # ConvTranspose1d(k=4, s=2, p=1) == zero-dilate + ordinary conv with flipped taps, pad=2.
    w_up = params['w_up'].astype(f32)
    xd = jnp.zeros((B, 2 * L - 1, Cin), f32).at[:, ::2, :].set(bf(x))
    xp = jnp.pad(xd, ((0, 0), (2, 2), (0, 0)))
    up = jnp.zeros((B, Lout, Cmid), f32)
    for j in range(4):
        up = up + jnp.einsum('blc,cd->bld', xp[:, j:j + Lout, :], w_up[3 - j])
    up = up + params['b_up']

    cat = jnp.concatenate([up, skip.astype(f32)], axis=-1)
    residual = jnp.einsum('blc,cd->bld', bf(cat), params['w_res'].astype(f32)) + params['b_res']

    def gn_silu(v, gamma, beta):
        Bv, Lv, Cv = v.shape
        g = v.reshape(Bv, Lv, groups, Cv // groups)
        mean = jnp.mean(g, axis=(1, 3), keepdims=True)
        var = jnp.mean((g - mean) ** 2, axis=(1, 3), keepdims=True)
        y = ((g - mean) * jax.lax.rsqrt(var + eps)).reshape(Bv, Lv, Cv)
        y = y * gamma + beta
        return silu(y)

    h1 = gn_silu(cat, params['g1'], params['bt1'])
    w_c1 = params['w_c1'].astype(f32)
    h1p = jnp.pad(bf(h1), ((0, 0), (1, 1), (0, 0)))
    h2 = jnp.zeros((B, Lout, params['b_c1'].shape[-1]), f32)
    for j in range(3):
        h2 = h2 + jnp.einsum('blc,cd->bld', h1p[:, j:j + Lout, :], w_c1[j])
    h2 = h2 + params['b_c1']

    tcb = (jnp.dot(silu(t_emb.astype(f32)), params['w_t'].astype(f32)) + params['b_t']
           + jnp.dot(silu(c_emb.astype(f32)), params['w_c'].astype(f32)) + params['b_c'])
    h2 = h2 + tcb[:, None, :]

    h3 = gn_silu(h2, params['g2'], params['bt2'])
    w_c2 = params['w_c2'].astype(f32)
    h3p = jnp.pad(bf(h3), ((0, 0), (1, 1), (0, 0)))
    out = jnp.zeros_like(h2)
    for j in range(3):
        out = out + jnp.einsum('blc,cd->bld', h3p[:, j:j + Lout, :], w_c2[j])
    return out + params['b_c2'] + residual


# ----------------------------------- main -----------------------------------

if __name__ == "__main__":
    B = 2
    IN_CH = 64          # in_channels  (upsample -> 32 channels, concat -> 96 channels)
    OUT_CH = 64         # out_channels (divisible by 8 for GroupNorm)
    TIME_DIM = 32
    COND_DIM = 32
    L_IN = 8            # bottleneck length; skip / output length = 16

    key = jax.random.PRNGKey(0)
    kp, kx, ks, kt, kc = jax.random.split(key, 5)
    params = init_upblock_params(kp, IN_CH, OUT_CH, TIME_DIM, COND_DIM)

    x = jax.random.normal(kx, (B, L_IN, IN_CH), jnp.float32)            # channels-last (B, L, C)
    skip = jax.random.normal(ks, (B, 2 * L_IN, IN_CH), jnp.float32)
    t_emb = jax.random.normal(kt, (B, TIME_DIM), jnp.float32)
    c_emb = jax.random.normal(kc, (B, COND_DIM), jnp.float32)

    fwd = jax.jit(upblock_forward)
    out = fwd(params, x, skip, t_emb, c_emb)
    jax.block_until_ready(out)

    ref = upblock_reference(params, x, skip, t_emb, c_emb)
    err = float(jnp.max(jnp.abs(out - ref)))

    assert out.shape == (B, 2 * L_IN, OUT_CH)
    assert bool(jnp.all(jnp.isfinite(out)))
    assert err < 2e-2, f"kernel/reference mismatch: max abs err {err}"
    print("KERNEL_OK")
</pallas_src>

<mosaic_0001>
module attributes {stable_mosaic.version = 11 : i64} {
  func.func @_upblock_kernel(%arg0: i32, %arg1: memref<1x16x64xbf16, #tpu.memory_space<vmem>>, %arg2: memref<1x16x64xf32, #tpu.memory_space<vmem>>, %arg3: memref<1x1x64xf32, #tpu.memory_space<vmem>>, %arg4: memref<4x64x32xbf16, #tpu.memory_space<vmem>>, %arg5: memref<1x32xf32, #tpu.memory_space<vmem>>, %arg6: memref<96x64xbf16, #tpu.memory_space<vmem>>, %arg7: memref<1x64xf32, #tpu.memory_space<vmem>>, %arg8: memref<1x96xf32, #tpu.memory_space<vmem>>, %arg9: memref<1x96xf32, #tpu.memory_space<vmem>>, %arg10: memref<3x96x64xbf16, #tpu.memory_space<vmem>>, %arg11: memref<1x64xf32, #tpu.memory_space<vmem>>, %arg12: memref<1x64xf32, #tpu.memory_space<vmem>>, %arg13: memref<1x64xf32, #tpu.memory_space<vmem>>, %arg14: memref<3x64x64xbf16, #tpu.memory_space<vmem>>, %arg15: memref<1x64xf32, #tpu.memory_space<vmem>>, %arg16: memref<1x16x64xf32, #tpu.memory_space<vmem>>) attributes {dimension_semantics = [#tpu.dimension_semantics<parallel>], iteration_bounds = array<i64: 2>, scalar_prefetch = 0 : i64, scratch_operands = 0 : i64, tpu.core_type = #tpu.core_type<tc>, window_params = [{transform_indices = @transform_0, window_bounds = array<i64: 1, 16, 64>}, {transform_indices = @transform_1, window_bounds = array<i64: 1, 16, 64>}, {transform_indices = @transform_2, window_bounds = array<i64: 1, 1, 64>}, {pipeline_mode = #tpu.pipeline_mode<synchronous>, transform_indices = @transform_3, window_bounds = array<i64: 4, 64, 32>}, {pipeline_mode = #tpu.pipeline_mode<synchronous>, transform_indices = @transform_4, window_bounds = array<i64: 1, 32>}, {pipeline_mode = #tpu.pipeline_mode<synchronous>, transform_indices = @transform_5, window_bounds = array<i64: 96, 64>}, {pipeline_mode = #tpu.pipeline_mode<synchronous>, transform_indices = @transform_6, window_bounds = array<i64: 1, 64>}, {pipeline_mode = #tpu.pipeline_mode<synchronous>, transform_indices = @transform_7, window_bounds = array<i64: 1, 96>}, {pipeline_mode = #tpu.pipeline_mode<synchronous>, transform_indices = @transform_8, window_bounds = array<i64: 1, 96>}, {pipeline_mode = #tpu.pipeline_mode<synchronous>, transform_indices = @transform_9, window_bounds = array<i64: 3, 96, 64>}, {pipeline_mode = #tpu.pipeline_mode<synchronous>, transform_indices = @transform_10, window_bounds = array<i64: 1, 64>}, {pipeline_mode = #tpu.pipeline_mode<synchronous>, transform_indices = @transform_11, window_bounds = array<i64: 1, 64>}, {pipeline_mode = #tpu.pipeline_mode<synchronous>, transform_indices = @transform_12, window_bounds = array<i64: 1, 64>}, {pipeline_mode = #tpu.pipeline_mode<synchronous>, transform_indices = @transform_13, window_bounds = array<i64: 3, 64, 64>}, {pipeline_mode = #tpu.pipeline_mode<synchronous>, transform_indices = @transform_14, window_bounds = array<i64: 1, 64>}, {transform_indices = @transform_15, window_bounds = array<i64: 1, 16, 64>}]} {
    %c0 = arith.constant 0 : index
    %c0_0 = arith.constant 0 : index
    %c0_1 = arith.constant 0 : index
    %0 = vector.load %arg1[%c0, %c0_0, %c0_1] : memref<1x16x64xbf16, #tpu.memory_space<vmem>>, vector<1x16x64xbf16>
    %1 = vector.shape_cast %0 : vector<1x16x64xbf16> to vector<16x64xbf16>
    %c0_2 = arith.constant 0 : index
    %c0_3 = arith.constant 0 : index
    %c0_4 = arith.constant 0 : index
    %2 = vector.load %arg2[%c0_2, %c0_3, %c0_4] : memref<1x16x64xf32, #tpu.memory_space<vmem>>, vector<1x16x64xf32>
    %3 = vector.shape_cast %2 : vector<1x16x64xf32> to vector<16x64xf32>
    %c0_5 = arith.constant 0 : index
    %c0_6 = arith.constant 0 : index
    %c0_7 = arith.constant 0 : index
    %4 = vector.load %arg4[%c0_5, %c0_6, %c0_7] : memref<4x64x32xbf16, #tpu.memory_space<vmem>>, vector<1x64x32xbf16>
    %5 = vector.shape_cast %4 : vector<1x64x32xbf16> to vector<64x32xbf16>
    %cst = arith.constant dense<0.000000e+00> : vector<16x32xf32>
    %6 = tpu.matmul %1, %5, %cst {dimension_numbers = #tpu.dot_dimension_numbers<[1], [0], [0], [1], [0, 0, 1, 1], [], []>} : vector<16x64xbf16>, vector<64x32xbf16>, vector<16x32xf32> -> vector<16x32xf32>
    %c1 = arith.constant 1 : index
    %c0_8 = arith.constant 0 : index
    %c0_9 = arith.constant 0 : index
    %7 = vector.load %arg4[%c1, %c0_8, %c0_9] : memref<4x64x32xbf16, #tpu.memory_space<vmem>>, vector<1x64x32xbf16>
    %8 = vector.shape_cast %7 : vector<1x64x32xbf16> to vector<64x32xbf16>
    %cst_10 = arith.constant dense<0.000000e+00> : vector<16x32xf32>
    %9 = tpu.matmul %1, %8, %cst_10 {dimension_numbers = #tpu.dot_dimension_numbers<[1], [0], [0], [1], [0, 0, 1, 1], [], []>} : vector<16x64xbf16>, vector<64x32xbf16>, vector<16x32xf32> -> vector<16x32xf32>
    %c2 = arith.constant 2 : index
    %c0_11 = arith.constant 0 : index
    %c0_12 = arith.constant 0 : index
    %10 = vector.load %arg4[%c2, %c0_11, %c0_12] : memref<4x64x32xbf16, #tpu.memory_space<vmem>>, vector<1x64x32xbf16>
    %11 = vector.shape_cast %10 : vector<1x64x32xbf16> to vector<64x32xbf16>
    %cst_13 = arith.constant dense<0.000000e+00> : vector<16x32xf32>
    %12 = tpu.matmul %1, %11, %cst_13 {dimension_numbers = #tpu.dot_dimension_numbers<[1], [0], [0], [1], [0, 0, 1, 1], [], []>} : vector<16x64xbf16>, vector<64x32xbf16>, vector<16x32xf32> -> vector<16x32xf32>
    %c3 = arith.constant 3 : index
    %c0_14 = arith.constant 0 : index
    %c0_15 = arith.constant 0 : index
    %13 = vector.load %arg4[%c3, %c0_14, %c0_15] : memref<4x64x32xbf16, #tpu.memory_space<vmem>>, vector<1x64x32xbf16>
    %14 = vector.shape_cast %13 : vector<1x64x32xbf16> to vector<64x32xbf16>
    %cst_16 = arith.constant dense<0.000000e+00> : vector<16x32xf32>
    %15 = tpu.matmul %1, %14, %cst_16 {dimension_numbers = #tpu.dot_dimension_numbers<[1], [0], [0], [1], [0, 0, 1, 1], [], []>} : vector<16x64xbf16>, vector<64x32xbf16>, vector<16x32xf32> -> vector<16x32xf32>
    %16 = tpu.iota {dimensions = array<i32: 0>} : vector<16x32xi32>
    %c1_i32 = arith.constant 1 : i32
    %17 = vector.broadcast %c1_i32 : i32 to vector<16x32xi32>
    %18 = arith.andi %16, %17 : vector<16x32xi32>
    %c0_i32 = arith.constant 0 : i32
    %19 = vector.broadcast %c0_i32 : i32 to vector<16x32xi32>
    %20 = arith.cmpi eq, %18, %19 : vector<16x32xi32>
    %c2_i32 = arith.constant 2 : i32
    %21 = vector.broadcast %c2_i32 : i32 to vector<16x32xi32>
    %22 = arith.cmpi sge, %16, %21 : vector<16x32xi32>
    %c2_i32_17 = arith.constant 2 : i32
    %23 = tpu.dynamic_rotate %15 by %c2_i32_17 dim 0 : vector<16x32xf32>, i32 -> vector<16x32xf32>
    %cst_18 = arith.constant 0.000000e+00 : f32
    %24 = vector.broadcast %cst_18 : f32 to vector<16x32xf32>
    %25 = arith.select %22, %23, %24 : vector<16x32xi1>, vector<16x32xf32>
    %c14_i32 = arith.constant 14 : i32
    %26 = vector.broadcast %c14_i32 : i32 to vector<16x32xi32>
    %27 = arith.cmpi sle, %16, %26 : vector<16x32xi32>
    %c15_i32 = arith.constant 15 : i32
    %28 = tpu.dynamic_rotate %6 by %c15_i32 dim 0 : vector<16x32xf32>, i32 -> vector<16x32xf32>
    %cst_19 = arith.constant 0.000000e+00 : f32
    %29 = vector.broadcast %cst_19 : f32 to vector<16x32xf32>
    %30 = arith.select %27, %28, %29 : vector<16x32xi1>, vector<16x32xf32>
    %31 = arith.addf %9, %25 : vector<16x32xf32>
    %32 = arith.addf %12, %30 : vector<16x32xf32>
    %33 = arith.select %20, %31, %32 : vector<16x32xi1>, vector<16x32xf32>
    %c0_20 = arith.constant 0 : index
    %c0_21 = arith.constant 0 : index
    %34 = vector.load %arg5[%c0_20, %c0_21] : memref<1x32xf32, #tpu.memory_space<vmem>>, vector<1x32xf32>
    %35 = vector.broadcast %34 : vector<1x32xf32> to vector<16x32xf32>
    %36 = arith.addf %33, %35 : vector<16x32xf32>
    %37 = tpu.concatenate %36, %3 in 1 : vector<16x32xf32>, vector<16x64xf32> -> vector<16x96xf32>
    %38 = arith.truncf %37 : vector<16x96xf32> to vector<16x96xbf16>
    %c0_22 = arith.constant 0 : index
    %c0_23 = arith.constant 0 : index
    %39 = vector.load %arg6[%c0_22, %c0_23] : memref<96x64xbf16, #tpu.memory_space<vmem>>, vector<96x64xbf16>
    %cst_24 = arith.constant dense<0.000000e+00> : vector<16x64xf32>
    %40 = tpu.matmul %38, %39, %cst_24 {dimension_numbers = #tpu.dot_dimension_numbers<[1], [0], [0], [1], [0, 0, 1, 1], [], []>} : vector<16x96xbf16>, vector<96x64xbf16>, vector<16x64xf32> -> vector<16x64xf32>
    %c0_25 = arith.constant 0 : index
    %c0_26 = arith.constant 0 : index
    %41 = vector.load %arg7[%c0_25, %c0_26] : memref<1x64xf32, #tpu.memory_space<vmem>>, vector<1x64xf32>
    %42 = vector.broadcast %41 : vector<1x64xf32> to vector<16x64xf32>
    %43 = arith.addf %40, %42 : vector<16x64xf32>
    %44 = tpu.iota {dimensions = array<i32: 0>} : vector<16x64xi32>
    %c0_27 = arith.constant 0 : index
    %c0_28 = arith.constant 0 : index
    %45 = vector.load %arg8[%c0_27, %c0_28] : memref<1x96xf32, #tpu.memory_space<vmem>>, vector<1x96xf32>
    %c0_29 = arith.constant 0 : index
    %c0_30 = arith.constant 0 : index
    %46 = vector.load %arg9[%c0_29, %c0_30] : memref<1x96xf32, #tpu.memory_space<vmem>>, vector<1x96xf32>
    %47 = tpu.iota {dimensions = array<i32: 0>} : vector<96x8xi32>
    %48 = tpu.iota {dimensions = array<i32: 1>} : vector<96x8xi32>
    %c12_i32 = arith.constant 12 : i32
    %49 = vector.broadcast %c12_i32 : i32 to vector<96x8xi32>
    %50 = arith.muli %48, %49 : vector<96x8xi32>
    %51 = arith.cmpi sge, %47, %50 : vector<96x8xi32>
    %c1_i32_31 = arith.constant 1 : i32
    %52 = vector.broadcast %c1_i32_31 : i32 to vector<96x8xi32>
    %53 = arith.addi %48, %52 : vector<96x8xi32>
    %c12_i32_32 = arith.constant 12 : i32
    %54 = vector.broadcast %c12_i32_32 : i32 to vector<96x8xi32>
    %55 = arith.muli %53, %54 : vector<96x8xi32>
    %56 = arith.cmpi slt, %47, %55 : vector<96x8xi32>
    %57 = arith.andi %51, %56 : vector<96x8xi1>
    %58 = arith.extui %57 : vector<96x8xi1> to vector<96x8xi32>
    %59 = arith.sitofp %58 : vector<96x8xi32> to vector<96x8xf32>
    %60 = tpu.iota {dimensions = array<i32: 1>} : vector<8x96xi32>
    %61 = tpu.iota {dimensions = array<i32: 0>} : vector<8x96xi32>
    %c12_i32_33 = arith.constant 12 : i32
    %62 = vector.broadcast %c12_i32_33 : i32 to vector<8x96xi32>
    %63 = arith.muli %61, %62 : vector<8x96xi32>
    %64 = arith.cmpi sge, %60, %63 : vector<8x96xi32>
    %c1_i32_34 = arith.constant 1 : i32
    %65 = vector.broadcast %c1_i32_34 : i32 to vector<8x96xi32>
    %66 = arith.addi %61, %65 : vector<8x96xi32>
    %c12_i32_35 = arith.constant 12 : i32
    %67 = vector.broadcast %c12_i32_35 : i32 to vector<8x96xi32>
    %68 = arith.muli %66, %67 : vector<8x96xi32>
    %69 = arith.cmpi slt, %60, %68 : vector<8x96xi32>
    %70 = arith.andi %64, %69 : vector<8x96xi1>
    %71 = arith.extui %70 : vector<8x96xi1> to vector<8x96xi32>
    %72 = arith.sitofp %71 : vector<8x96xi32> to vector<8x96xf32>
    %cst_36 = arith.constant dense<0.000000e+00> : vector<96xf32>
    %73 = vector.multi_reduction <add>, %37, %cst_36 [0] : vector<16x96xf32> to vector<96xf32>
    %74 = vector.shape_cast %73 : vector<96xf32> to vector<1x96xf32>
    %cst_37 = arith.constant dense<0.000000e+00> : vector<1x8xf32>
    %75 = tpu.matmul %74, %59, %cst_37 {dimension_numbers = #tpu.dot_dimension_numbers<[1], [0], [0], [1], [0, 0, 1, 1], [], []>} : vector<1x96xf32>, vector<96x8xf32>, vector<1x8xf32> -> vector<1x8xf32>
    %cst_38 = arith.constant 1.920000e+02 : f32
    %76 = vector.broadcast %cst_38 : f32 to vector<1x8xf32>
    %77 = arith.divf %75, %76 : vector<1x8xf32>
    %cst_39 = arith.constant dense<0.000000e+00> : vector<1x96xf32>
    %78 = tpu.matmul %77, %72, %cst_39 {dimension_numbers = #tpu.dot_dimension_numbers<[1], [0], [0], [1], [0, 0, 1, 1], [], []>} : vector<1x8xf32>, vector<8x96xf32>, vector<1x96xf32> -> vector<1x96xf32>
    %79 = vector.broadcast %78 : vector<1x96xf32> to vector<16x96xf32>
    %80 = arith.subf %37, %79 : vector<16x96xf32>
    %81 = arith.mulf %80, %80 : vector<16x96xf32>
    %cst_40 = arith.constant dense<0.000000e+00> : vector<96xf32>
    %82 = vector.multi_reduction <add>, %81, %cst_40 [0] : vector<16x96xf32> to vector<96xf32>
    %83 = vector.shape_cast %82 : vector<96xf32> to vector<1x96xf32>
    %cst_41 = arith.constant dense<0.000000e+00> : vector<1x8xf32>
    %84 = tpu.matmul %83, %59, %cst_41 {dimension_numbers = #tpu.dot_dimension_numbers<[1], [0], [0], [1], [0, 0, 1, 1], [], []>} : vector<1x96xf32>, vector<96x8xf32>, vector<1x8xf32> -> vector<1x8xf32>
    %cst_42 = arith.constant 1.920000e+02 : f32
    %85 = vector.broadcast %cst_42 : f32 to vector<1x8xf32>
    %86 = arith.divf %84, %85 : vector<1x8xf32>
    %cst_43 = arith.constant 9.99999974E-6 : f32
    %87 = vector.broadcast %cst_43 : f32 to vector<1x8xf32>
    %88 = arith.addf %86, %87 : vector<1x8xf32>
    %89 = math.rsqrt %88 : vector<1x8xf32>
    %cst_44 = arith.constant dense<0.000000e+00> : vector<1x96xf32>
    %90 = tpu.matmul %89, %72, %cst_44 {dimension_numbers = #tpu.dot_dimension_numbers<[1], [0], [0], [1], [0, 0, 1, 1], [], []>} : vector<1x8xf32>, vector<8x96xf32>, vector<1x96xf32> -> vector<1x96xf32>
    %91 = vector.broadcast %90 : vector<1x96xf32> to vector<16x96xf32>
    %92 = arith.mulf %80, %91 : vector<16x96xf32>
    %93 = vector.broadcast %45 : vector<1x96xf32> to vector<16x96xf32>
    %94 = arith.mulf %92, %93 : vector<16x96xf32>
    %95 = vector.broadcast %46 : vector<1x96xf32> to vector<16x96xf32>
    %96 = arith.addf %94, %95 : vector<16x96xf32>
    %97 = arith.negf %96 : vector<16x96xf32>
    %98 = math.exp %97 : vector<16x96xf32>
    %cst_45 = arith.constant 1.000000e+00 : f32
    %99 = vector.broadcast %cst_45 : f32 to vector<16x96xf32>
    %100 = arith.addf %99, %98 : vector<16x96xf32>
    %101 = arith.divf %99, %100 : vector<16x96xf32>
    %102 = arith.mulf %96, %101 : vector<16x96xf32>
    %103 = arith.truncf %102 : vector<16x96xf32> to vector<16x96xbf16>
    %c0_46 = arith.constant 0 : index
    %c0_47 = arith.constant 0 : index
    %c0_48 = arith.constant 0 : index
    %104 = vector.load %arg10[%c0_46, %c0_47, %c0_48] : memref<3x96x64xbf16, #tpu.memory_space<vmem>>, vector<1x96x64xbf16>
    %105 = vector.shape_cast %104 : vector<1x96x64xbf16> to vector<96x64xbf16>
    %cst_49 = arith.constant dense<0.000000e+00> : vector<16x64xf32>
    %106 = tpu.matmul %103, %105, %cst_49 {dimension_numbers = #tpu.dot_dimension_numbers<[1], [0], [0], [1], [0, 0, 1, 1], [], []>} : vector<16x96xbf16>, vector<96x64xbf16>, vector<16x64xf32> -> vector<16x64xf32>
    %c1_50 = arith.constant 1 : index
    %c0_51 = arith.constant 0 : index
    %c0_52 = arith.constant 0 : index
    %107 = vector.load %arg10[%c1_50, %c0_51, %c0_52] : memref<3x96x64xbf16, #tpu.memory_space<vmem>>, vector<1x96x64xbf16>
    %108 = vector.shape_cast %107 : vector<1x96x64xbf16> to vector<96x64xbf16>
    %cst_53 = arith.constant dense<0.000000e+00> : vector<16x64xf32>
    %109 = tpu.matmul %103, %108, %cst_53 {dimension_numbers = #tpu.dot_dimension_numbers<[1], [0], [0], [1], [0, 0, 1, 1], [], []>} : vector<16x96xbf16>, vector<96x64xbf16>, vector<16x64xf32> -> vector<16x64xf32>
    %c2_54 = arith.constant 2 : index
    %c0_55 = arith.constant 0 : index
    %c0_56 = arith.constant 0 : index
    %110 = vector.load %arg10[%c2_54, %c0_55, %c0_56] : memref<3x96x64xbf16, #tpu.memory_space<vmem>>, vector<1x96x64xbf16>
    %111 = vector.shape_cast %110 : vector<1x96x64xbf16> to vector<96x64xbf16>
    %cst_57 = arith.constant dense<0.000000e+00> : vector<16x64xf32>
    %112 = tpu.matmul %103, %111, %cst_57 {dimension_numbers = #tpu.dot_dimension_numbers<[1], [0], [0], [1], [0, 0, 1, 1], [], []>} : vector<16x96xbf16>, vector<96x64xbf16>, vector<16x64xf32> -> vector<16x64xf32>
    %c1_i32_58 = arith.constant 1 : i32
    %113 = vector.broadcast %c1_i32_58 : i32 to vector<16x64xi32>
    %114 = arith.cmpi sge, %44, %113 : vector<16x64xi32>
    %c1_i32_59 = arith.constant 1 : i32
    %115 = tpu.dynamic_rotate %106 by %c1_i32_59 dim 0 : vector<16x64xf32>, i32 -> vector<16x64xf32>
    %cst_60 = arith.constant 0.000000e+00 : f32
    %116 = vector.broadcast %cst_60 : f32 to vector<16x64xf32>
    %117 = arith.select %114, %115, %116 : vector<16x64xi1>, vector<16x64xf32>
    %c14_i32_61 = arith.constant 14 : i32
    %118 = vector.broadcast %c14_i32_61 : i32 to vector<16x64xi32>
    %119 = arith.cmpi sle, %44, %118 : vector<16x64xi32>
    %c15_i32_62 = arith.constant 15 : i32
    %120 = tpu.dynamic_rotate %112 by %c15_i32_62 dim 0 : vector<16x64xf32>, i32 -> vector<16x64xf32>
    %cst_63 = arith.constant 0.000000e+00 : f32
    %121 = vector.broadcast %cst_63 : f32 to vector<16x64xf32>
    %122 = arith.select %119, %120, %121 : vector<16x64xi1>, vector<16x64xf32>
    %123 = arith.addf %117, %109 : vector<16x64xf32>
    %124 = arith.addf %123, %122 : vector<16x64xf32>
    %c0_64 = arith.constant 0 : index
    %c0_65 = arith.constant 0 : index
    %125 = vector.load %arg11[%c0_64, %c0_65] : memref<1x64xf32, #tpu.memory_space<vmem>>, vector<1x64xf32>
    %126 = vector.broadcast %125 : vector<1x64xf32> to vector<16x64xf32>
    %127 = arith.addf %124, %126 : vector<16x64xf32>
    %c0_66 = arith.constant 0 : index
    %c0_67 = arith.constant 0 : index
    %c0_68 = arith.constant 0 : index
    %128 = vector.load %arg3[%c0_66, %c0_67, %c0_68] : memref<1x1x64xf32, #tpu.memory_space<vmem>>, vector<1x1x64xf32>
    %129 = vector.shape_cast %128 : vector<1x1x64xf32> to vector<1x64xf32>
    %130 = vector.broadcast %129 : vector<1x64xf32> to vector<16x64xf32>
    %131 = arith.addf %127, %130 : vector<16x64xf32>
    %c0_69 = arith.constant 0 : index
    %c0_70 = arith.constant 0 : index
    %132 = vector.load %arg12[%c0_69, %c0_70] : memref<1x64xf32, #tpu.memory_space<vmem>>, vector<1x64xf32>
    %c0_71 = arith.constant 0 : index
    %c0_72 = arith.constant 0 : index
    %133 = vector.load %arg13[%c0_71, %c0_72] : memref<1x64xf32, #tpu.memory_space<vmem>>, vector<1x64xf32>
    %134 = tpu.iota {dimensions = array<i32: 0>} : vector<64x8xi32>
    %135 = tpu.iota {dimensions = array<i32: 1>} : vector<64x8xi32>
    %c8_i32 = arith.constant 8 : i32
    %136 = vector.broadcast %c8_i32 : i32 to vector<64x8xi32>
    %137 = arith.muli %135, %136 : vector<64x8xi32>
    %138 = arith.cmpi sge, %134, %137 : vector<64x8xi32>
    %c1_i32_73 = arith.constant 1 : i32
    %139 = vector.broadcast %c1_i32_73 : i32 to vector<64x8xi32>
    %140 = arith.addi %135, %139 : vector<64x8xi32>
    %c8_i32_74 = arith.constant 8 : i32
    %141 = vector.broadcast %c8_i32_74 : i32 to vector<64x8xi32>
    %142 = arith.muli %140, %141 : vector<64x8xi32>
    %143 = arith.cmpi slt, %134, %142 : vector<64x8xi32>
    %144 = arith.andi %138, %143 : vector<64x8xi1>
    %145 = arith.extui %144 : vector<64x8xi1> to vector<64x8xi32>
    %146 = arith.sitofp %145 : vector<64x8xi32> to vector<64x8xf32>
    %147 = tpu.iota {dimensions = array<i32: 1>} : vector<8x64xi32>
    %148 = tpu.iota {dimensions = array<i32: 0>} : vector<8x64xi32>
    %c8_i32_75 = arith.constant 8 : i32
    %149 = vector.broadcast %c8_i32_75 : i32 to vector<8x64xi32>
    %150 = arith.muli %148, %149 : vector<8x64xi32>
    %151 = arith.cmpi sge, %147, %150 : vector<8x64xi32>
    %c1_i32_76 = arith.constant 1 : i32
    %152 = vector.broadcast %c1_i32_76 : i32 to vector<8x64xi32>
    %153 = arith.addi %148, %152 : vector<8x64xi32>
    %c8_i32_77 = arith.constant 8 : i32
    %154 = vector.broadcast %c8_i32_77 : i32 to vector<8x64xi32>
    %155 = arith.muli %153, %154 : vector<8x64xi32>
    %156 = arith.cmpi slt, %147, %155 : vector<8x64xi32>
    %157 = arith.andi %151, %156 : vector<8x64xi1>
    %158 = arith.extui %157 : vector<8x64xi1> to vector<8x64xi32>
    %159 = arith.sitofp %158 : vector<8x64xi32> to vector<8x64xf32>
    %cst_78 = arith.constant dense<0.000000e+00> : vector<64xf32>
    %160 = vector.multi_reduction <add>, %131, %cst_78 [0] : vector<16x64xf32> to vector<64xf32>
    %161 = vector.shape_cast %160 : vector<64xf32> to vector<1x64xf32>
    %cst_79 = arith.constant dense<0.000000e+00> : vector<1x8xf32>
    %162 = tpu.matmul %161, %146, %cst_79 {dimension_numbers = #tpu.dot_dimension_numbers<[1], [0], [0], [1], [0, 0, 1, 1], [], []>} : vector<1x64xf32>, vector<64x8xf32>, vector<1x8xf32> -> vector<1x8xf32>
    %cst_80 = arith.constant 1.280000e+02 : f32
    %163 = vector.broadcast %cst_80 : f32 to vector<1x8xf32>
    %164 = arith.divf %162, %163 : vector<1x8xf32>
    %cst_81 = arith.constant dense<0.000000e+00> : vector<1x64xf32>
    %165 = tpu.matmul %164, %159, %cst_81 {dimension_numbers = #tpu.dot_dimension_numbers<[1], [0], [0], [1], [0, 0, 1, 1], [], []>} : vector<1x8xf32>, vector<8x64xf32>, vector<1x64xf32> -> vector<1x64xf32>
    %166 = vector.broadcast %165 : vector<1x64xf32> to vector<16x64xf32>
    %167 = arith.subf %131, %166 : vector<16x64xf32>
    %168 = arith.mulf %167, %167 : vector<16x64xf32>
    %cst_82 = arith.constant dense<0.000000e+00> : vector<64xf32>
    %169 = vector.multi_reduction <add>, %168, %cst_82 [0] : vector<16x64xf32> to vector<64xf32>
    %170 = vector.shape_cast %169 : vector<64xf32> to vector<1x64xf32>
    %cst_83 = arith.constant dense<0.000000e+00> : vector<1x8xf32>
    %171 = tpu.matmul %170, %146, %cst_83 {dimension_numbers = #tpu.dot_dimension_numbers<[1], [0], [0], [1], [0, 0, 1, 1], [], []>} : vector<1x64xf32>, vector<64x8xf32>, vector<1x8xf32> -> vector<1x8xf32>
    %cst_84 = arith.constant 1.280000e+02 : f32
    %172 = vector.broadcast %cst_84 : f32 to vector<1x8xf32>
    %173 = arith.divf %171, %172 : vector<1x8xf32>
    %cst_85 = arith.constant 9.99999974E-6 : f32
    %174 = vector.broadcast %cst_85 : f32 to vector<1x8xf32>
    %175 = arith.addf %173, %174 : vector<1x8xf32>
    %176 = math.rsqrt %175 : vector<1x8xf32>
    %cst_86 = arith.constant dense<0.000000e+00> : vector<1x64xf32>
    %177 = tpu.matmul %176, %159, %cst_86 {dimension_numbers = #tpu.dot_dimension_numbers<[1], [0], [0], [1], [0, 0, 1, 1], [], []>} : vector<1x8xf32>, vector<8x64xf32>, vector<1x64xf32> -> vector<1x64xf32>
    %178 = vector.broadcast %177 : vector<1x64xf32> to vector<16x64xf32>
    %179 = arith.mulf %167, %178 : vector<16x64xf32>
    %180 = vector.broadcast %132 : vector<1x64xf32> to vector<16x64xf32>
    %181 = arith.mulf %179, %180 : vector<16x64xf32>
    %182 = vector.broadcast %133 : vector<1x64xf32> to vector<16x64xf32>
    %183 = arith.addf %181, %182 : vector<16x64xf32>
    %184 = arith.negf %183 : vector<16x64xf32>
    %185 = math.exp %184 : vector<16x64xf32>
    %cst_87 = arith.constant 1.000000e+00 : f32
    %186 = vector.broadcast %cst_87 : f32 to vector<16x64xf32>
    %187 = arith.addf %186, %185 : vector<16x64xf32>
    %188 = arith.divf %186, %187 : vector<16x64xf32>
    %189 = arith.mulf %183, %188 : vector<16x64xf32>
    %190 = arith.truncf %189 : vector<16x64xf32> to vector<16x64xbf16>
    %c0_88 = arith.constant 0 : index
    %c0_89 = arith.constant 0 : index
    %c0_90 = arith.constant 0 : index
    %191 = vector.load %arg14[%c0_88, %c0_89, %c0_90] : memref<3x64x64xbf16, #tpu.memory_space<vmem>>, vector<1x64x64xbf16>
    %192 = vector.shape_cast %191 : vector<1x64x64xbf16> to vector<64x64xbf16>
    %cst_91 = arith.constant dense<0.000000e+00> : vector<16x64xf32>
    %193 = tpu.matmul %190, %192, %cst_91 {dimension_numbers = #tpu.dot_dimension_numbers<[1], [0], [0], [1], [0, 0, 1, 1], [], []>} : vector<16x64xbf16>, vector<64x64xbf16>, vector<16x64xf32> -> vector<16x64xf32>
    %c1_92 = arith.constant 1 : index
    %c0_93 = arith.constant 0 : index
    %c0_94 = arith.constant 0 : index
    %194 = vector.load %arg14[%c1_92, %c0_93, %c0_94] : memref<3x64x64xbf16, #tpu.memory_space<vmem>>, vector<1x64x64xbf16>
    %195 = vector.shape_cast %194 : vector<1x64x64xbf16> to vector<64x64xbf16>
    %cst_95 = arith.constant dense<0.000000e+00> : vector<16x64xf32>
    %196 = tpu.matmul %190, %195, %cst_95 {dimension_numbers = #tpu.dot_dimension_numbers<[1], [0], [0], [1], [0, 0, 1, 1], [], []>} : vector<16x64xbf16>, vector<64x64xbf16>, vector<16x64xf32> -> vector<16x64xf32>
    %c2_96 = arith.constant 2 : index
    %c0_97 = arith.constant 0 : index
    %c0_98 = arith.constant 0 : index
    %197 = vector.load %arg14[%c2_96, %c0_97, %c0_98] : memref<3x64x64xbf16, #tpu.memory_space<vmem>>, vector<1x64x64xbf16>
    %198 = vector.shape_cast %197 : vector<1x64x64xbf16> to vector<64x64xbf16>
    %cst_99 = arith.constant dense<0.000000e+00> : vector<16x64xf32>
    %199 = tpu.matmul %190, %198, %cst_99 {dimension_numbers = #tpu.dot_dimension_numbers<[1], [0], [0], [1], [0, 0, 1, 1], [], []>} : vector<16x64xbf16>, vector<64x64xbf16>, vector<16x64xf32> -> vector<16x64xf32>
    %c1_i32_100 = arith.constant 1 : i32
    %200 = vector.broadcast %c1_i32_100 : i32 to vector<16x64xi32>
    %201 = arith.cmpi sge, %44, %200 : vector<16x64xi32>
    %c1_i32_101 = arith.constant 1 : i32
    %202 = tpu.dynamic_rotate %193 by %c1_i32_101 dim 0 : vector<16x64xf32>, i32 -> vector<16x64xf32>
    %cst_102 = arith.constant 0.000000e+00 : f32
    %203 = vector.broadcast %cst_102 : f32 to vector<16x64xf32>
    %204 = arith.select %201, %202, %203 : vector<16x64xi1>, vector<16x64xf32>
    %c14_i32_103 = arith.constant 14 : i32
    %205 = vector.broadcast %c14_i32_103 : i32 to vector<16x64xi32>
    %206 = arith.cmpi sle, %44, %205 : vector<16x64xi32>
    %c15_i32_104 = arith.constant 15 : i32
    %207 = tpu.dynamic_rotate %199 by %c15_i32_104 dim 0 : vector<16x64xf32>, i32 -> vector<16x64xf32>
    %cst_105 = arith.constant 0.000000e+00 : f32
    %208 = vector.broadcast %cst_105 : f32 to vector<16x64xf32>
    %209 = arith.select %206, %207, %208 : vector<16x64xi1>, vector<16x64xf32>
    %210 = arith.addf %204, %196 : vector<16x64xf32>
    %211 = arith.addf %210, %209 : vector<16x64xf32>
    %c0_106 = arith.constant 0 : index
    %c0_107 = arith.constant 0 : index
    %212 = vector.load %arg15[%c0_106, %c0_107] : memref<1x64xf32, #tpu.memory_space<vmem>>, vector<1x64xf32>
    %213 = vector.broadcast %212 : vector<1x64xf32> to vector<16x64xf32>
    %214 = arith.addf %211, %213 : vector<16x64xf32>
    %215 = arith.addf %214, %43 : vector<16x64xf32>
    %c0_108 = arith.constant 0 : index
    %c0_109 = arith.constant 0 : index
    %c0_110 = arith.constant 0 : index
    %216 = vector.load %arg16[%c0_108, %c0_109, %c0_110] : memref<1x16x64xf32, #tpu.memory_space<vmem>>, vector<1x16x64xf32>
    %217 = vector.shape_cast %216 : vector<1x16x64xf32> to vector<16x64xf32>
    %218 = vector.shape_cast %215 : vector<16x64xf32> to vector<1x16x64xf32>
    tpu.vector_store %arg16[%c0_108, %c0_109, %c0_110], %218 {strides = array<i32>} : memref<1x16x64xf32, #tpu.memory_space<vmem>>, vector<1x16x64xf32>,
    return
  }
  func.func @transform_0(%arg0: i32) -> (i32, i32, i32) {
    %c0_i32 = arith.constant 0 : i32
    %c0_i32_0 = arith.constant 0 : i32
    %c0_i32_1 = arith.constant 0 : i32
    return %arg0, %c0_i32, %c0_i32_0 : i32, i32, i32
  }
  func.func @transform_1(%arg0: i32) -> (i32, i32, i32) {
    %c0_i32 = arith.constant 0 : i32
    %c0_i32_0 = arith.constant 0 : i32
    %c0_i32_1 = arith.constant 0 : i32
    return %arg0, %c0_i32, %c0_i32_0 : i32, i32, i32
  }
  func.func @transform_2(%arg0: i32) -> (i32, i32, i32) {
    %c0_i32 = arith.constant 0 : i32
    %c0_i32_0 = arith.constant 0 : i32
    %c0_i32_1 = arith.constant 0 : i32
    return %arg0, %c0_i32, %c0_i32_0 : i32, i32, i32
  }
  func.func @transform_3(%arg0: i32) -> (i32, i32, i32) {
    %c0_i32 = arith.constant 0 : i32
    %c0_i32_0 = arith.constant 0 : i32
    %c0_i32_1 = arith.constant 0 : i32
    %c0_i32_2 = arith.constant 0 : i32
    return %c0_i32, %c0_i32_0, %c0_i32_1 : i32, i32, i32
  }
  func.func @transform_4(%arg0: i32) -> (i32, i32) {
    %c0_i32 = arith.constant 0 : i32
    %c0_i32_0 = arith.constant 0 : i32
    %c0_i32_1 = arith.constant 0 : i32
    return %c0_i32, %c0_i32_0 : i32, i32
  }
  func.func @transform_5(%arg0: i32) -> (i32, i32) {
    %c0_i32 = arith.constant 0 : i32
    %c0_i32_0 = arith.constant 0 : i32
    %c0_i32_1 = arith.constant 0 : i32
    return %c0_i32, %c0_i32_0 : i32, i32
  }
  func.func @transform_6(%arg0: i32) -> (i32, i32) {
    %c0_i32 = arith.constant 0 : i32
    %c0_i32_0 = arith.constant 0 : i32
    %c0_i32_1 = arith.constant 0 : i32
    return %c0_i32, %c0_i32_0 : i32, i32
  }
  func.func @transform_7(%arg0: i32) -> (i32, i32) {
    %c0_i32 = arith.constant 0 : i32
    %c0_i32_0 = arith.constant 0 : i32
    %c0_i32_1 = arith.constant 0 : i32
    return %c0_i32, %c0_i32_0 : i32, i32
  }
  func.func @transform_8(%arg0: i32) -> (i32, i32) {
    %c0_i32 = arith.constant 0 : i32
    %c0_i32_0 = arith.constant 0 : i32
    %c0_i32_1 = arith.constant 0 : i32
    return %c0_i32, %c0_i32_0 : i32, i32
  }
  func.func @transform_9(%arg0: i32) -> (i32, i32, i32) {
    %c0_i32 = arith.constant 0 : i32
    %c0_i32_0 = arith.constant 0 : i32
    %c0_i32_1 = arith.constant 0 : i32
    %c0_i32_2 = arith.constant 0 : i32
    return %c0_i32, %c0_i32_0, %c0_i32_1 : i32, i32, i32
  }
  func.func @transform_10(%arg0: i32) -> (i32, i32) {
    %c0_i32 = arith.constant 0 : i32
    %c0_i32_0 = arith.constant 0 : i32
    %c0_i32_1 = arith.constant 0 : i32
    return %c0_i32, %c0_i32_0 : i32, i32
  }
  func.func @transform_11(%arg0: i32) -> (i32, i32) {
    %c0_i32 = arith.constant 0 : i32
    %c0_i32_0 = arith.constant 0 : i32
    %c0_i32_1 = arith.constant 0 : i32
    return %c0_i32, %c0_i32_0 : i32, i32
  }
  func.func @transform_12(%arg0: i32) -> (i32, i32) {
    %c0_i32 = arith.constant 0 : i32
    %c0_i32_0 = arith.constant 0 : i32
    %c0_i32_1 = arith.constant 0 : i32
    return %c0_i32, %c0_i32_0 : i32, i32
  }
  func.func @transform_13(%arg0: i32) -> (i32, i32, i32) {
    %c0_i32 = arith.constant 0 : i32
    %c0_i32_0 = arith.constant 0 : i32
    %c0_i32_1 = arith.constant 0 : i32
    %c0_i32_2 = arith.constant 0 : i32
    return %c0_i32, %c0_i32_0, %c0_i32_1 : i32, i32, i32
  }
  func.func @transform_14(%arg0: i32) -> (i32, i32) {
    %c0_i32 = arith.constant 0 : i32
    %c0_i32_0 = arith.constant 0 : i32
    %c0_i32_1 = arith.constant 0 : i32
    return %c0_i32, %c0_i32_0 : i32, i32
  }
  func.func @transform_15(%arg0: i32) -> (i32, i32, i32) {
    %c0_i32 = arith.constant 0 : i32
    %c0_i32_0 = arith.constant 0 : i32
    %c0_i32_1 = arith.constant 0 : i32
    return %arg0, %c0_i32, %c0_i32_0 : i32, i32, i32
  }
}

</mosaic_0001>

<llo_original>
// kernel: upblock_forward.1
$region0: #{upblock_forward.1}
  #allocation0 [shape = 'u32[]', space=smem, size = 0x4, offset = 0x4, fixed_abs, tag = 'smem constant byte address 0x4 - core index']
  #allocation1 [shape = 'u32[144,128]{1,0:T(1,128)}', space=vmem, size = 0x12000, scoped, tag = 'internal scratch']
  %s0 = inlined_call_operand.vmem [shape: bf16[2,16,64], index: 0, kind: input, shape index: {}]
  %s1 = inlined_call_operand.vmem [shape: f32[2,16,64], index: 1, kind: input, shape index: {}]
  %s2 = inlined_call_operand.vmem [shape: f32[2,1,64], index: 2, kind: input, shape index: {}]
  %s3 = inlined_call_operand.vmem [shape: bf16[4,64,32], index: 3, kind: input, shape index: {}]
  %s4 = inlined_call_operand.vmem [shape: f32[1,32], index: 4, kind: input, shape index: {}]
  %s5 = inlined_call_operand.vmem [shape: bf16[96,64], index: 5, kind: input, shape index: {}]
  %s6 = inlined_call_operand.vmem [shape: f32[1,64], index: 6, kind: input, shape index: {}]
  %s7 = inlined_call_operand.vmem [shape: f32[1,96], index: 7, kind: input, shape index: {}]
  %s8 = inlined_call_operand.vmem [shape: f32[1,96], index: 8, kind: input, shape index: {}]
  %s9 = inlined_call_operand.vmem [shape: bf16[3,96,64], index: 9, kind: input, shape index: {}]
  %s10 = inlined_call_operand.vmem [shape: f32[1,64], index: 10, kind: input, shape index: {}]
  %s11 = inlined_call_operand.vmem [shape: f32[1,64], index: 11, kind: input, shape index: {}]
  %s12 = inlined_call_operand.vmem [shape: f32[1,64], index: 12, kind: input, shape index: {}]
  %s13 = inlined_call_operand.vmem [shape: bf16[3,64,64], index: 13, kind: input, shape index: {}]
  %s14 = inlined_call_operand.vmem [shape: f32[1,64], index: 14, kind: input, shape index: {}]
  %s15 = inlined_call_operand.hbm [shape: f32[2,16,64], index: 15, kind: output, shape index: {}]
  %s16 = sld [smem:[#allocation0]]
  $region93: #{upblock_forward.1} parent=0
    _
  %s18 = ssub.s32 1, %s16
  %s19 = scalar_select 0, %s18, %s16
  $region1: #{upblock_forward.1} parent=0
    #allocation2 [shape = 'u8[16384]{0}', space=vmem, size = 0x4000, scoped, tag = 'output window, operand 0']
    #allocation3 [shape = 's32[2]{0}', space=sflag, size = 0x8, scoped, tag = 'scoped memory for upblock_forward.1']
    %20 = vsyncpa [#allocation3], 0
    %s21 = scalar_lea.sflag [#allocation3], 1
    %22 = vsyncpa %s21, 0
    loop: start=0, step=1, limit=4
    $region2: #{upblock_forward.1} parent=1 // loop_pre_header
      _
    $region3: #{upblock_forward.1} parent=1 // loop_header
      %s24 = sphi 0, %s28
      %p25 = scmp.ge.s32.totalorder %s24, 4
      %s34 = sphi 0, %s36
      %s37 = sphi 0, %s34
      %s38 = sphi 0, %s37
      %s54 = sphi 0, %s38
      %s60 = sphi 0, %s62
      %s63 = sphi 0, %s60
      %s64 = sphi 0, %s63
      %s80 = sphi 0, %s64
      %s86 = sphi 0, %s88
      %s89 = sphi 0, %s86
      %s90 = sphi 0, %s89
      %s106 = sphi 0, %s90
      %s110 = sphi 0, %s110
      %s112 = sphi 0, %s110
      %s113 = sphi 0, %s112
      %s127 = sphi 0, %s113
      %s131 = sphi 0, %s131
      %s133 = sphi 0, %s131
      %s134 = sphi 0, %s133
      %s148 = sphi 0, %s134
      %s152 = sphi 0, %s152
      %s154 = sphi 0, %s152
      %s155 = sphi 0, %s154
      %s169 = sphi 0, %s155
      %s173 = sphi 0, %s173
      %s175 = sphi 0, %s173
      %s176 = sphi 0, %s175
      %s190 = sphi 0, %s176
      %s194 = sphi 0, %s194
      %s196 = sphi 0, %s194
      %s197 = sphi 0, %s196
      %s211 = sphi 0, %s197
      %s215 = sphi 0, %s215
      %s217 = sphi 0, %s215
      %s218 = sphi 0, %s217
      %s232 = sphi 0, %s218
      %s236 = sphi 0, %s236
      %s238 = sphi 0, %s236
      %s239 = sphi 0, %s238
      %s253 = sphi 0, %s239
      %s257 = sphi 0, %s257
      %s259 = sphi 0, %s257
      %s260 = sphi 0, %s259
      %s274 = sphi 0, %s260
      %s278 = sphi 0, %s278
      %s280 = sphi 0, %s278
      %s281 = sphi 0, %s280
      %s295 = sphi 0, %s281
      %s299 = sphi 0, %s299
      %s301 = sphi 0, %s299
      %s302 = sphi 0, %s301
      %s316 = sphi 0, %s302
      %s320 = sphi 0, %s320
      %s322 = sphi 0, %s320
      %s323 = sphi 0, %s322
      %s337 = sphi 0, %s323
      %s341 = sphi 0, %s341
      %s343 = sphi 0, %s341
      %s344 = sphi 0, %s343
      %s358 = sphi 0, %s344
      %s364 = sphi 0, %s366
      %s367 = sphi 0, %s364
      %s368 = sphi 0, %s367
      %s384 = sphi 0, %s368
    $region4: #{upblock_forward.1} parent=1 // loop_header_branch
      %27 = sbr.rel (%p25) target = $region8
    $region5: #{upblock_forward.1} parent=1 // loop_body
      %s29 = ssub.s32 %s24, 1
      %s30 = ssub.s32 %s24, 2
      %s31 = sadd.s32 %s24, 1
      %s32 = ssub.s32 %s24, %s31
      %p33 = scmp.eq.s32.totalorder %s32, 0
      %s35 = sadd.s32 %s34, 1
      %s36 = scalar_select %p33, %s34, %s35
      %p39 = pneg %p33
      %p40 = scmp.eq.s32.totalorder %s24, 1
      %p41 = por %p39, %p40
      %p42 = scmp.ne.s32.totalorder %s34, %s37
      %p43 = scmp.eq.s32.totalorder %s24, 0
      %p44 = por %p42, %p43
      %p45 = scmp.ne.s32.totalorder %s34, %s37
      %p46 = scmp.eq.s32.totalorder %s29, 1
      %p47 = por %p45, %p46
      %p48 = scmp.ne.s32.totalorder %s37, %s38
      %p49 = scmp.eq.s32.totalorder %s29, 0
      %p50 = por %p48, %p49
      %p51 = scmp.ne.s32.totalorder %s37, %s38
      %p52 = scmp.eq.s32.totalorder %s30, 1
      %p53 = por %p51, %p52
      %p55 = scmp.ne.s32.totalorder %s38, %s54
      %p56 = scmp.eq.s32.totalorder %s30, 0
      %p57 = por %p55, %p56
      %s58 = ssub.s32 %s24, %s31
      %p59 = scmp.eq.s32.totalorder %s58, 0
      %s61 = sadd.s32 %s60, 1
      %s62 = scalar_select %p59, %s60, %s61
      %p65 = pneg %p59
      %p66 = scmp.eq.s32.totalorder %s24, 1
      %p67 = por %p65, %p66
      %p68 = scmp.ne.s32.totalorder %s60, %s63
      %p69 = scmp.eq.s32.totalorder %s24, 0
      %p70 = por %p68, %p69
      %p71 = scmp.ne.s32.totalorder %s60, %s63
      %p72 = scmp.eq.s32.totalorder %s29, 1
      %p73 = por %p71, %p72
      %p74 = scmp.ne.s32.totalorder %s63, %s64
      %p75 = scmp.eq.s32.totalorder %s29, 0
      %p76 = por %p74, %p75
      %p77 = scmp.ne.s32.totalorder %s63, %s64
      %p78 = scmp.eq.s32.totalorder %s30, 1
      %p79 = por %p77, %p78
      %p81 = scmp.ne.s32.totalorder %s64, %s80
      %p82 = scmp.eq.s32.totalorder %s30, 0
      %p83 = por %p81, %p82
      %s84 = ssub.s32 %s24, %s31
      %p85 = scmp.eq.s32.totalorder %s84, 0
      %s87 = sadd.s32 %s86, 1
      %s88 = scalar_select %p85, %s86, %s87
      %p91 = pneg %p85
      %p92 = scmp.eq.s32.totalorder %s24, 1
      %p93 = por %p91, %p92
      %p94 = scmp.ne.s32.totalorder %s86, %s89
      %p95 = scmp.eq.s32.totalorder %s24, 0
      %p96 = por %p94, %p95
      %p97 = scmp.ne.s32.totalorder %s86, %s89
      %p98 = scmp.eq.s32.totalorder %s29, 1
      %p99 = por %p97, %p98
      %p100 = scmp.ne.s32.totalorder %s89, %s90
      %p101 = scmp.eq.s32.totalorder %s29, 0
      %p102 = por %p100, %p101
      %p103 = scmp.ne.s32.totalorder %s89, %s90
      %p104 = scmp.eq.s32.totalorder %s30, 1
      %p105 = por %p103, %p104
      %p107 = scmp.ne.s32.totalorder %s90, %s106
      %p108 = scmp.eq.s32.totalorder %s30, 0
      %p109 = por %p107, %p108
      %s111 = sadd.s32 %s110, 1
      %p114 = scmp.eq.s32.totalorder %s24, 1
      %p115 = scmp.ne.s32.totalorder %s110, %s112
      %p116 = scmp.eq.s32.totalorder %s24, 0
      %p117 = por %p115, %p116
      %p118 = scmp.ne.s32.totalorder %s110, %s112
      %p119 = scmp.eq.s32.totalorder %s29, 1
      %p120 = por %p118, %p119
      %p121 = scmp.ne.s32.totalorder %s112, %s113
      %p122 = scmp.eq.s32.totalorder %s29, 0
      %p123 = por %p121, %p122
      %p124 = scmp.ne.s32.totalorder %s112, %s113
      %p125 = scmp.eq.s32.totalorder %s30, 1
      %p126 = por %p124, %p125
      %p128 = scmp.ne.s32.totalorder %s113, %s127
      %p129 = scmp.eq.s32.totalorder %s30, 0
      %p130 = por %p128, %p129
      %s132 = sadd.s32 %s131, 1
      %p135 = scmp.eq.s32.totalorder %s24, 1
      %p136 = scmp.ne.s32.totalorder %s131, %s133
      %p137 = scmp.eq.s32.totalorder %s24, 0
      %p138 = por %p136, %p137
      %p139 = scmp.ne.s32.totalorder %s131, %s133
      %p140 = scmp.eq.s32.totalorder %s29, 1
      %p141 = por %p139, %p140
      %p142 = scmp.ne.s32.totalorder %s133, %s134
      %p143 = scmp.eq.s32.totalorder %s29, 0
      %p144 = por %p142, %p143
      %p145 = scmp.ne.s32.totalorder %s133, %s134
      %p146 = scmp.eq.s32.totalorder %s30, 1
      %p147 = por %p145, %p146
      %p149 = scmp.ne.s32.totalorder %s134, %s148
      %p150 = scmp.eq.s32.totalorder %s30, 0
      %p151 = por %p149, %p150
      %s153 = sadd.s32 %s152, 1
      %p156 = scmp.eq.s32.totalorder %s24, 1
      %p157 = scmp.ne.s32.totalorder %s152, %s154
      %p158 = scmp.eq.s32.totalorder %s24, 0
      %p159 = por %p157, %p158
      %p160 = scmp.ne.s32.totalorder %s152, %s154
      %p161 = scmp.eq.s32.totalorder %s29, 1
      %p162 = por %p160, %p161
      %p163 = scmp.ne.s32.totalorder %s154, %s155
      %p164 = scmp.eq.s32.totalorder %s29, 0
      %p165 = por %p163, %p164
      %p166 = scmp.ne.s32.totalorder %s154, %s155
      %p167 = scmp.eq.s32.totalorder %s30, 1
      %p168 = por %p166, %p167
      %p170 = scmp.ne.s32.totalorder %s155, %s169
      %p171 = scmp.eq.s32.totalorder %s30, 0
      %p172 = por %p170, %p171
      %s174 = sadd.s32 %s173, 1
      %p177 = scmp.eq.s32.totalorder %s24, 1
      %p178 = scmp.ne.s32.totalorder %s173, %s175
      %p179 = scmp.eq.s32.totalorder %s24, 0
      %p180 = por %p178, %p179
      %p181 = scmp.ne.s32.totalorder %s173, %s175
      %p182 = scmp.eq.s32.totalorder %s29, 1
      %p183 = por %p181, %p182
      %p184 = scmp.ne.s32.totalorder %s175, %s176
      %p185 = scmp.eq.s32.totalorder %s29, 0
      %p186 = por %p184, %p185
      %p187 = scmp.ne.s32.totalorder %s175, %s176
      %p188 = scmp.eq.s32.totalorder %s30, 1
      %p189 = por %p187, %p188
      %p191 = scmp.ne.s32.totalorder %s176, %s190
      %p192 = scmp.eq.s32.totalorder %s30, 0
      %p193 = por %p191, %p192
      %s195 = sadd.s32 %s194, 1
      %p198 = scmp.eq.s32.totalorder %s24, 1
      %p199 = scmp.ne.s32.totalorder %s194, %s196
      %p200 = scmp.eq.s32.totalorder %s24, 0
      %p201 = por %p199, %p200
      %p202 = scmp.ne.s32.totalorder %s194, %s196
      %p203 = scmp.eq.s32.totalorder %s29, 1
      %p204 = por %p202, %p203
      %p205 = scmp.ne.s32.totalorder %s196, %s197
      %p206 = scmp.eq.s32.totalorder %s29, 0
      %p207 = por %p205, %p206
      %p208 = scmp.ne.s32.totalorder %s196, %s197
      %p209 = scmp.eq.s32.totalorder %s30, 1
      %p210 = por %p208, %p209
      %p212 = scmp.ne.s32.totalorder %s197, %s211
      %p213 = scmp.eq.s32.totalorder %s30, 0
      %p214 = por %p212, %p213
      %s216 = sadd.s32 %s215, 1
      %p219 = scmp.eq.s32.totalorder %s24, 1
      %p220 = scmp.ne.s32.totalorder %s215, %s217
      %p221 = scmp.eq.s32.totalorder %s24, 0
      %p222 = por %p220, %p221
      %p223 = scmp.ne.s32.totalorder %s215, %s217
      %p224 = scmp.eq.s32.totalorder %s29, 1
      %p225 = por %p223, %p224
      %p226 = scmp.ne.s32.totalorder %s217, %s218
      %p227 = scmp.eq.s32.totalorder %s29, 0
      %p228 = por %p226, %p227
      %p229 = scmp.ne.s32.totalorder %s217, %s218
      %p230 = scmp.eq.s32.totalorder %s30, 1
      %p231 = por %p229, %p230
      %p233 = scmp.ne.s32.totalorder %s218, %s232
      %p234 = scmp.eq.s32.totalorder %s30, 0
      %p235 = por %p233, %p234
      %s237 = sadd.s32 %s236, 1
      %p240 = scmp.eq.s32.totalorder %s24, 1
      %p241 = scmp.ne.s32.totalorder %s236, %s238
      %p242 = scmp.eq.s32.totalorder %s24, 0
      %p243 = por %p241, %p242
      %p244 = scmp.ne.s32.totalorder %s236, %s238
      %p245 = scmp.eq.s32.totalorder %s29, 1
      %p246 = por %p244, %p245
      %p247 = scmp.ne.s32.totalorder %s238, %s239
      %p248 = scmp.eq.s32.totalorder %s29, 0
      %p249 = por %p247, %p248
      %p250 = scmp.ne.s32.totalorder %s238, %s239
      %p251 = scmp.eq.s32.totalorder %s30, 1
      %p252 = por %p250, %p251
      %p254 = scmp.ne.s32.totalorder %s239, %s253
      %p255 = scmp.eq.s32.totalorder %s30, 0
      %p256 = por %p254, %p255
      %s258 = sadd.s32 %s257, 1
      %p261 = scmp.eq.s32.totalorder %s24, 1
      %p262 = scmp.ne.s32.totalorder %s257, %s259
      %p263 = scmp.eq.s32.totalorder %s24, 0
      %p264 = por %p262, %p263
      %p265 = scmp.ne.s32.totalorder %s257, %s259
      %p266 = scmp.eq.s32.totalorder %s29, 1
      %p267 = por %p265, %p266
      %p268 = scmp.ne.s32.totalorder %s259, %s260
      %p269 = scmp.eq.s32.totalorder %s29, 0
      %p270 = por %p268, %p269
      %p271 = scmp.ne.s32.totalorder %s259, %s260
      %p272 = scmp.eq.s32.totalorder %s30, 1
      %p273 = por %p271, %p272
      %p275 = scmp.ne.s32.totalorder %s260, %s274
      %p276 = scmp.eq.s32.totalorder %s30, 0
      %p277 = por %p275, %p276
      %s279 = sadd.s32 %s278, 1
      %p282 = scmp.eq.s32.totalorder %s24, 1
      %p283 = scmp.ne.s32.totalorder %s278, %s280
      %p284 = scmp.eq.s32.totalorder %s24, 0
      %p285 = por %p283, %p284
      %p286 = scmp.ne.s32.totalorder %s278, %s280
      %p287 = scmp.eq.s32.totalorder %s29, 1
      %p288 = por %p286, %p287
      %p289 = scmp.ne.s32.totalorder %s280, %s281
      %p290 = scmp.eq.s32.totalorder %s29, 0
      %p291 = por %p289, %p290
      %p292 = scmp.ne.s32.totalorder %s280, %s281
      %p293 = scmp.eq.s32.totalorder %s30, 1
      %p294 = por %p292, %p293
      %p296 = scmp.ne.s32.totalorder %s281, %s295
      %p297 = scmp.eq.s32.totalorder %s30, 0
      %p298 = por %p296, %p297
      %s300 = sadd.s32 %s299, 1
      %p303 = scmp.eq.s32.totalorder %s24, 1
      %p304 = scmp.ne.s32.totalorder %s299, %s301
      %p305 = scmp.eq.s32.totalorder %s24, 0
      %p306 = por %p304, %p305
      %p307 = scmp.ne.s32.totalorder %s299, %s301
      %p308 = scmp.eq.s32.totalorder %s29, 1
      %p309 = por %p307, %p308
      %p310 = scmp.ne.s32.totalorder %s301, %s302
      %p311 = scmp.eq.s32.totalorder %s29, 0
      %p312 = por %p310, %p311
      %p313 = scmp.ne.s32.totalorder %s301, %s302
      %p314 = scmp.eq.s32.totalorder %s30, 1
      %p315 = por %p313, %p314
      %p317 = scmp.ne.s32.totalorder %s302, %s316
      %p318 = scmp.eq.s32.totalorder %s30, 0
      %p319 = por %p317, %p318
      %s321 = sadd.s32 %s320, 1
      %p324 = scmp.eq.s32.totalorder %s24, 1
      %p325 = scmp.ne.s32.totalorder %s320, %s322
      %p326 = scmp.eq.s32.totalorder %s24, 0
      %p327 = por %p325, %p326
      %p328 = scmp.ne.s32.totalorder %s320, %s322
      %p329 = scmp.eq.s32.totalorder %s29, 1
      %p330 = por %p328, %p329
      %p331 = scmp.ne.s32.totalorder %s322, %s323
      %p332 = scmp.eq.s32.totalorder %s29, 0
      %p333 = por %p331, %p332
      %p334 = scmp.ne.s32.totalorder %s322, %s323
      %p335 = scmp.eq.s32.totalorder %s30, 1
      %p336 = por %p334, %p335
      %p338 = scmp.ne.s32.totalorder %s323, %s337
      %p339 = scmp.eq.s32.totalorder %s30, 0
      %p340 = por %p338, %p339
      %s342 = sadd.s32 %s341, 1
      %p345 = scmp.eq.s32.totalorder %s24, 1
      %p346 = scmp.ne.s32.totalorder %s341, %s343
      %p347 = scmp.eq.s32.totalorder %s24, 0
      %p348 = por %p346, %p347
      %p349 = scmp.ne.s32.totalorder %s341, %s343
      %p350 = scmp.eq.s32.totalorder %s29, 1
      %p351 = por %p349, %p350
      %p352 = scmp.ne.s32.totalorder %s343, %s344
      %p353 = scmp.eq.s32.totalorder %s29, 0
      %p354 = por %p352, %p353
      %p355 = scmp.ne.s32.totalorder %s343, %s344
      %p356 = scmp.eq.s32.totalorder %s30, 1
      %p357 = por %p355, %p356
      %p359 = scmp.ne.s32.totalorder %s344, %s358
      %p360 = scmp.eq.s32.totalorder %s30, 0
      %p361 = por %p359, %p360
      %s362 = ssub.s32 %s24, %s31
      %p363 = scmp.eq.s32.totalorder %s362, 0
      %s365 = sadd.s32 %s364, 1
      %s366 = scalar_select %p363, %s364, %s365
      %p369 = pneg %p363
      %p370 = scmp.eq.s32.totalorder %s24, 1
      %p371 = por %p369, %p370
      %p372 = scmp.ne.s32.totalorder %s364, %s367
      %p373 = scmp.eq.s32.totalorder %s24, 0
      %p374 = por %p372, %p373
      %p375 = scmp.ne.s32.totalorder %s364, %s367
      %p376 = scmp.eq.s32.totalorder %s29, 1
      %p377 = por %p375, %p376
      %p378 = scmp.ne.s32.totalorder %s367, %s368
      %p379 = scmp.eq.s32.totalorder %s29, 0
      %p380 = por %p378, %p379
      %p381 = scmp.ne.s32.totalorder %s367, %s368
      %p382 = scmp.eq.s32.totalorder %s30, 1
      %p383 = por %p381, %p382
      %p385 = scmp.ne.s32.totalorder %s368, %s384
      %p386 = scmp.eq.s32.totalorder %s30, 0
      %p387 = por %p385, %p386
      %p388 = scmp.le.s32.totalorder 1, %s24
      %p389 = scmp.lt.s32.totalorder %s24, 3
      %p390 = pnand %p388, %p389
      %p391 = pneg %p390
      // Predicated region
      $region9: #{upblock_forward.1} parent=5 // pred_check
        _
      $region10: #{upblock_forward.1} parent=5 // pred_check_branch
        %393 = sbr.rel (%p390) target = $region12
      $region11: #{upblock_forward.1} parent=5 // pred_region
        %s394 = ssub.s32 %s24, 1
        // Predicated region
        $region13: #{upblock_forward.1} parent=11 // pred_check
          %p395 = pneg %p123
        $region14: #{upblock_forward.1} parent=11 // pred_check_branch
          %397 = sbr.rel (%p395) target = $region16
        $region15: #{upblock_forward.1} parent=11 // pred_region
          _
        $region16: #{upblock_forward.1} parent=11 // pred_fallthru
          _
        // Predicated region
        $region17: #{upblock_forward.1} parent=11 // pred_check
          %p398 = pneg %p144
        $region18: #{upblock_forward.1} parent=11 // pred_check_branch
          %400 = sbr.rel (%p398) target = $region20
        $region19: #{upblock_forward.1} parent=11 // pred_region
          _
        $region20: #{upblock_forward.1} parent=11 // pred_fallthru
          _
        // Predicated region
        $region21: #{upblock_forward.1} parent=11 // pred_check
          %p401 = pneg %p165
        $region22: #{upblock_forward.1} parent=11 // pred_check_branch
          %403 = sbr.rel (%p401) target = $region24
        $region23: #{upblock_forward.1} parent=11 // pred_region
          _
        $region24: #{upblock_forward.1} parent=11 // pred_fallthru
          _
        // Predicated region
        $region25: #{upblock_forward.1} parent=11 // pred_check
          %p404 = pneg %p186
        $region26: #{upblock_forward.1} parent=11 // pred_check_branch
          %406 = sbr.rel (%p404) target = $region28
        $region27: #{upblock_forward.1} parent=11 // pred_region
          _
        $region28: #{upblock_forward.1} parent=11 // pred_fallthru
          _
        // Predicated region
        $region29: #{upblock_forward.1} parent=11 // pred_check
          %p407 = pneg %p207
        $region30: #{upblock_forward.1} parent=11 // pred_check_branch
          %409 = sbr.rel (%p407) target = $region32
        $region31: #{upblock_forward.1} parent=11 // pred_region
          _
        $region32: #{upblock_forward.1} parent=11 // pred_fallthru
          _
        // Predicated region
        $region33: #{upblock_forward.1} parent=11 // pred_check
          %p410 = pneg %p228
        $region34: #{upblock_forward.1} parent=11 // pred_check_branch
          %412 = sbr.rel (%p410) target = $region36
        $region35: #{upblock_forward.1} parent=11 // pred_region
          _
        $region36: #{upblock_forward.1} parent=11 // pred_fallthru
          _
        // Predicated region
        $region37: #{upblock_forward.1} parent=11 // pred_check
          %p413 = pneg %p249
        $region38: #{upblock_forward.1} parent=11 // pred_check_branch
          %415 = sbr.rel (%p413) target = $region40
        $region39: #{upblock_forward.1} parent=11 // pred_region
          _
        $region40: #{upblock_forward.1} parent=11 // pred_fallthru
          _
        // Predicated region
        $region41: #{upblock_forward.1} parent=11 // pred_check
          %p416 = pneg %p270
        $region42: #{upblock_forward.1} parent=11 // pred_check_branch
          %418 = sbr.rel (%p416) target = $region44
        $region43: #{upblock_forward.1} parent=11 // pred_region
          _
        $region44: #{upblock_forward.1} parent=11 // pred_fallthru
          _
        // Predicated region
        $region45: #{upblock_forward.1} parent=11 // pred_check
          %p419 = pneg %p291
        $region46: #{upblock_forward.1} parent=11 // pred_check_branch
          %421 = sbr.rel (%p419) target = $region48
        $region47: #{upblock_forward.1} parent=11 // pred_region
          _
        $region48: #{upblock_forward.1} parent=11 // pred_fallthru
          _
        // Predicated region
        $region49: #{upblock_forward.1} parent=11 // pred_check
          %p422 = pneg %p312
        $region50: #{upblock_forward.1} parent=11 // pred_check_branch
          %424 = sbr.rel (%p422) target = $region52
        $region51: #{upblock_forward.1} parent=11 // pred_region
          _
        $region52: #{upblock_forward.1} parent=11 // pred_fallthru
          _
        // Predicated region
        $region53: #{upblock_forward.1} parent=11 // pred_check
          %p425 = pneg %p333
        $region54: #{upblock_forward.1} parent=11 // pred_check_branch
          %427 = sbr.rel (%p425) target = $region56
        $region55: #{upblock_forward.1} parent=11 // pred_region
          _
        $region56: #{upblock_forward.1} parent=11 // pred_fallthru
          _
        // Predicated region
        $region57: #{upblock_forward.1} parent=11 // pred_check
          %p428 = pneg %p354
        $region58: #{upblock_forward.1} parent=11 // pred_check_branch
          %430 = sbr.rel (%p428) target = $region60
        $region59: #{upblock_forward.1} parent=11 // pred_region
          _
        $region60: #{upblock_forward.1} parent=11 // pred_fallthru
          _
      $region12: #{upblock_forward.1} parent=5 // pred_fallthru
        _
      %p431 = scmp.lt.s32.totalorder %s24, 2
      // Predicated region
      $region61: #{upblock_forward.1} parent=5 // pred_check
        %p432 = pneg %p431
      $region62: #{upblock_forward.1} parent=5 // pred_check_branch
        %434 = sbr.rel (%p432) target = $region64
      $region63: #{upblock_forward.1} parent=5 // pred_region
        // Predicated region
        $region65: #{upblock_forward.1} parent=63 // pred_check
          %p435 = pneg %p44
        $region66: #{upblock_forward.1} parent=63 // pred_check_branch
          %437 = sbr.rel (%p435) target = $region68
        $region67: #{upblock_forward.1} parent=63 // pred_region
          %p438 = scmp.lt.s32.totalorder %s24, 1
          %s439 = scalar_select %p438, %s24, 1
          %s440 = smul.addr %s439, 2
          %s441 = smul.addr %s440, 4
          %s442 = scalar_lea.vmem %s0, %s441
        $region68: #{upblock_forward.1} parent=63 // pred_fallthru
          _
        // Predicated region
        $region69: #{upblock_forward.1} parent=63 // pred_check
          %p443 = pneg %p70
        $region70: #{upblock_forward.1} parent=63 // pred_check_branch
          %445 = sbr.rel (%p443) target = $region72
        $region71: #{upblock_forward.1} parent=63 // pred_region
          %p446 = scmp.lt.s32.totalorder %s24, 1
          %s447 = scalar_select %p446, %s24, 1
          %s448 = smul.addr %s447, 2
          %s449 = smul.addr %s448, 8
          %s450 = scalar_lea.vmem %s1, %s449
        $region72: #{upblock_forward.1} parent=63 // pred_fallthru
          _
        // Predicated region
        $region73: #{upblock_forward.1} parent=63 // pred_check
          %p451 = pneg %p96
        $region74: #{upblock_forward.1} parent=63 // pred_check_branch
          %453 = sbr.rel (%p451) target = $region76
        $region75: #{upblock_forward.1} parent=63 // pred_region
          %p454 = scmp.lt.s32.totalorder %s24, 1
          %s455 = scalar_select %p454, %s24, 1
          %s456 = scalar_lea.vmem %s2, %s455
        $region76: #{upblock_forward.1} parent=63 // pred_fallthru
          _
      $region64: #{upblock_forward.1} parent=5 // pred_fallthru
        _
      %p457 = scmp.le.s32.totalorder 1, %s24
      %p458 = scmp.lt.s32.totalorder %s24, 3
      %p459 = pnand %p457, %p458
      %p460 = pneg %p459
      // Predicated region
      $region77: #{upblock_forward.1} parent=5 // pred_check
        _
      $region78: #{upblock_forward.1} parent=5 // pred_check_branch
        %462 = sbr.rel (%p459) target = $region80
      $region79: #{upblock_forward.1} parent=5 // pred_region
        %s463 = ssub.s32 %s24, 1
        %p464 = scmp.lt.s32.totalorder %s29, 1
        %s465 = scalar_select %p464, %s29, 1
        %s466 = smul.addr %s465, 2
        %s467 = smul.addr %s466, 4
        %s468 = scalar_lea.vmem %s0, %s467
        %p469 = pneg %p50
        %p470 = pneg %p47
        %p471 = scmp.lt.s32.totalorder %s29, 1
        %s472 = scalar_select %p471, %s29, 1
        %s473 = smul.addr %s472, 2
        %s474 = smul.addr %s473, 8
        %s475 = scalar_lea.vmem %s1, %s474
        %p476 = pneg %p76
        %p477 = pneg %p73
        %p478 = scmp.lt.s32.totalorder %s29, 1
        %s479 = scalar_select %p478, %s29, 1
        %s480 = scalar_lea.vmem %s2, %s479
        %p481 = pneg %p102
        %p482 = pneg %p99
        %p483 = pneg %p123
        %p484 = pneg %p120
        %p485 = pneg %p144
        %p486 = pneg %p141
        %p487 = pneg %p165
        %p488 = pneg %p162
        %p489 = pneg %p186
        %p490 = pneg %p183
        %p491 = pneg %p207
        %p492 = pneg %p204
        %p493 = pneg %p228
        %p494 = pneg %p225
        %p495 = pneg %p249
        %p496 = pneg %p246
        %p497 = pneg %p270
        %p498 = pneg %p267
        %p499 = pneg %p291
        %p500 = pneg %p288
        %p501 = pneg %p312
        %p502 = pneg %p309
        %p503 = pneg %p333
        %p504 = pneg %p330
        %p505 = pneg %p354
        %p506 = pneg %p351
        %p507 = pneg %p380
        %p508 = pneg %p377
        %s509 = sand.u32 %s367, 1
        %s510 = scalar_lea.sflag [#allocation3], %s509
        %s511 = sand.u32 %s367, 1
        %s512 = smul.addr %s511, 16
        %s513 = scalar_lea.vmem [#allocation2], %s512
        %p514 = scmp.lt.s32.totalorder %s29, 1
        %s515 = scalar_select %p514, %s29, 1
        %s516 = smul.addr %s515, 2
        %s517 = smul.addr %s516, 4
        %s518 = scalar_lea.vmem %s0, %s517
        %p519 = scmp.lt.s32.totalorder %s29, 1
        %s520 = scalar_select %p519, %s29, 1
        %s521 = smul.addr %s520, 2
        %s522 = smul.addr %s521, 8
        %s523 = scalar_lea.vmem %s1, %s522
        %p524 = scmp.lt.s32.totalorder %s29, 1
        %s525 = scalar_select %p524, %s29, 1
        %s526 = scalar_lea.vmem %s2, %s525
        %v528 = vld [vmem:[%s518] sm:$0xf]
        %v529 = vld [vmem:[%s518 + $0x4] sm:$0xf]
        %v530 = vld [vmem:[%s523] sm:$0xff]
        %v531 = vld [vmem:[%s523 + $0x8] sm:$0xff]
        %v532 = vld [vmem:[%s3] sm:$0xf]
        %v533 = vld [vmem:[%s3 + $0x4] sm:$0xf]
        %v534 = vld [vmem:[%s3 + $0x8] sm:$0xf]
        %v535 = vld [vmem:[%s3 + $0xc] sm:$0xf]
        %v536 = vld [vmem:[%s3 + $0x10] sm:$0xf]
        %v537 = vld [vmem:[%s3 + $0x14] sm:$0xf]
        %v538 = vld [vmem:[%s3 + $0x18] sm:$0xf]
        %v539 = vld [vmem:[%s3 + $0x1c] sm:$0xf]
        %v542 = vunpack.c.l.b16 %v528
        %v543 = vunpack.c.l.b16 %v529
        %v544 = vpack.c.b16 %v543, %v542
        %v553 = vunpack.c.l.b16 %v532
        %v554 = vunpack.c.l.b16 %v533
        %v555 = vunpack.c.l.b16 %v534
        %v556 = vunpack.c.l.b16 %v535
        %v557 = vunpack.c.l.b16 %v536
        %v558 = vunpack.c.l.b16 %v537
        %v559 = vunpack.c.l.b16 %v538
        %v560 = vunpack.c.l.b16 %v539
        %v561 = vpack.c.b16 %v554, %v553
        %v562 = vpack.c.b16 %v556, %v555
        %v563 = vpack.c.b16 %v558, %v557
        %v564 = vpack.c.b16 %v560, %v559
        %vm569 = vcmask 523264
        %v571 = vsel %vm569, %v544, 0
        %573 = vmatprep.subr.bf16.mxu0 0
        %574 = vmatpush1.bf16.msra.mxu0 0
        %575 = vmatprep.subr.bf16.mxu0 0
        %576 = vmatpush1.bf16.msra.mxu0 0
        %577 = vmatprep.subr.bf16.mxu0 0
        %578 = vmatpush1.bf16.msra.mxu0 0
        %579 = vmatprep.subr.bf16.mxu0 0
        %580 = vmatpush1.bf16.msra.mxu0 0
        %581 = vmatprep.subr.bf16.mxu0 0
        %582 = vmatpush1.bf16.msra.mxu0 %v564
        %583 = vmatprep.subr.bf16.mxu0 0
        %584 = vmatpush1.bf16.msra.mxu0 %v563
        %585 = vmatprep.subr.bf16.mxu0 0
        %586 = vmatpush1.bf16.msra.mxu0 %v562
        %587 = vmatprep.subr.bf16.mxu0 0
        %588 = vmatpush1.bf16.msra.mxu0 %v561
        %589 = vmatprep.subr.bf16.mxu0 0
        %590 = vmatpush2.bf16.msra.mxu0 0
        %591 = vmatprep.subr.bf16.mxu0 0
        %592 = vmatpush2.bf16.msra.mxu0 0
        %593 = vmatprep.subr.bf16.mxu0 0
        %594 = vmatpush2.bf16.msra.mxu0 0
        %595 = vmatprep.subr.bf16.mxu0 0
        %596 = vmatpush2.bf16.msra.mxu0 0
        %597 = vmatprep.subr.bf16.mxu0 0
        %598 = vmatpush2.bf16.msra.mxu0 0
        %599 = vmatprep.subr.bf16.mxu0 0
        %600 = vmatpush2.bf16.msra.mxu0 0
        %601 = vmatprep.subr.bf16.mxu0 0
        %602 = vmatpush2.bf16.msra.mxu0 0
        %603 = vmatprep.subr.bf16.mxu0 0
        %604 = vmatpush2.bf16.msra.mxu0 0
        %605 = vmatprep.mubr.bf16.mxu0 0
        %606 = vmatmul.mubr.bf16.gmra.mxu0 %v571
        %v607 = vpop.f32.mrf.mxu0
        %v608 = vadd.f32 0.0, %v607
        %v609 = vpop.f32.mrf.mxu0
        %v610 = vpop.f32.mrf.mxu0
        %v611 = vadd.f32 0.0, %v610
        %v612 = vpop.f32.mrf.mxu0
        %613 = vdwg.mxu0
        %s614 = scalar_lea.vmem %s3, 32
        %v615 = vld [vmem:[%s614] sm:$0xf]
        %v616 = vld [vmem:[%s614 + $0x4] sm:$0xf]
        %v617 = vld [vmem:[%s614 + $0x8] sm:$0xf]
        %v618 = vld [vmem:[%s614 + $0xc] sm:$0xf]
        %v619 = vld [vmem:[%s614 + $0x10] sm:$0xf]
        %v620 = vld [vmem:[%s614 + $0x14] sm:$0xf]
        %v621 = vld [vmem:[%s614 + $0x18] sm:$0xf]
        %v622 = vld [vmem:[%s614 + $0x1c] sm:$0xf]
        %s623 = scalar_lea.vmem %s3, 64
        %v624 = vld [vmem:[%s623] sm:$0xf]
        %v625 = vld [vmem:[%s623 + $0x4] sm:$0xf]
        %v626 = vld [vmem:[%s623 + $0x8] sm:$0xf]
        %v627 = vld [vmem:[%s623 + $0xc] sm:$0xf]
        %v628 = vld [vmem:[%s623 + $0x10] sm:$0xf]
        %v629 = vld [vmem:[%s623 + $0x14] sm:$0xf]
        %v630 = vld [vmem:[%s623 + $0x18] sm:$0xf]
        %v631 = vld [vmem:[%s623 + $0x1c] sm:$0xf]
        %s632 = scalar_lea.vmem %s3, 96
        %v633 = vld [vmem:[%s632] sm:$0xf]
        %v634 = vld [vmem:[%s632 + $0x4] sm:$0xf]
        %v635 = vld [vmem:[%s632 + $0x8] sm:$0xf]
        %v636 = vld [vmem:[%s632 + $0xc] sm:$0xf]
        %v637 = vld [vmem:[%s632 + $0x10] sm:$0xf]
        %v638 = vld [vmem:[%s632 + $0x14] sm:$0xf]
        %v639 = vld [vmem:[%s632 + $0x18] sm:$0xf]
        %v640 = vld [vmem:[%s632 + $0x1c] sm:$0xf]
        %v649 = vunpack.c.l.b16 %v633
        %v650 = vunpack.c.l.b16 %v634
        %v651 = vunpack.c.l.b16 %v635
        %v652 = vunpack.c.l.b16 %v636
        %v653 = vunpack.c.l.b16 %v637
        %v654 = vunpack.c.l.b16 %v638
        %v655 = vunpack.c.l.b16 %v639
        %v656 = vunpack.c.l.b16 %v640
        %v657 = vpack.c.b16 %v650, %v649
        %v658 = vpack.c.b16 %v652, %v651
        %v659 = vpack.c.b16 %v654, %v653
        %v660 = vpack.c.b16 %v656, %v655
        %665 = vmatprep.subr.bf16.mxu0 0
        %666 = vmatpush1.bf16.msra.mxu0 0
        %667 = vmatprep.subr.bf16.mxu0 0
        %668 = vmatpush1.bf16.msra.mxu0 0
        %669 = vmatprep.subr.bf16.mxu0 0
        %670 = vmatpush1.bf16.msra.mxu0 0
        %671 = vmatprep.subr.bf16.mxu0 0
        %672 = vmatpush1.bf16.msra.mxu0 0
        %673 = vmatprep.subr.bf16.mxu0 0
        %674 = vmatpush1.bf16.msra.mxu0 %v660
        %675 = vmatprep.subr.bf16.mxu0 0
        %676 = vmatpush1.bf16.msra.mxu0 %v659
        %677 = vmatprep.subr.bf16.mxu0 0
        %678 = vmatpush1.bf16.msra.mxu0 %v658
        %679 = vmatprep.subr.bf16.mxu0 0
        %680 = vmatpush1.bf16.msra.mxu0 %v657
        %681 = vmatprep.subr.bf16.mxu0 0
        %682 = vmatpush2.bf16.msra.mxu0 0
        %683 = vmatprep.subr.bf16.mxu0 0
        %684 = vmatpush2.bf16.msra.mxu0 0
        %685 = vmatprep.subr.bf16.mxu0 0
        %686 = vmatpush2.bf16.msra.mxu0 0
        %687 = vmatprep.subr.bf16.mxu0 0
        %688 = vmatpush2.bf16.msra.mxu0 0
        %689 = vmatprep.subr.bf16.mxu0 0
        %690 = vmatpush2.bf16.msra.mxu0 0
        %691 = vmatprep.subr.bf16.mxu0 0
        %692 = vmatpush2.bf16.msra.mxu0 0
        %693 = vmatprep.subr.bf16.mxu0 0
        %694 = vmatpush2.bf16.msra.mxu0 0
        %695 = vmatprep.subr.bf16.mxu0 0
        %696 = vmatpush2.bf16.msra.mxu0 0
        %697 = vmatprep.mubr.bf16.mxu0 0
        %698 = vmatmul.mubr.bf16.gmra.mxu0 %v571
        %v699 = vpop.f32.mrf.mxu0
        %v700 = vadd.f32 0.0, %v699
        %v701 = vpop.f32.mrf.mxu0
        %v702 = vpop.f32.mrf.mxu0
        %v703 = vadd.f32 0.0, %v702
        %v704 = vpop.f32.mrf.mxu0
        %705 = vdwg.mxu0
        %v706 = vlaneseq
        %v707 = vshrl.u32 %v706, 7
        %v708 = vadd.s32 %v707, 8
        %v709 = vand.u32 %v707, 1
        %v710 = vand.u32 %v708, 1
        %vm711 = vcmp.eq.s32.totalorder %v709, 0
        %vm712 = vcmp.eq.s32.totalorder %v710, 0
        %vm713 = vcmp.ge.s32.totalorder %v707, 2
        %vm714 = vcmp.ge.s32.totalorder %v708, 2
        %v715 = vrot.slane %v700, 6
        %v716 = vrot.slane %v703, 6
        %vm717 = vcmp.lt.s32.totalorder %v707, 2
        %v718 = vsel %vm717, %v715, %v716
        %v719 = vsel %vm717, %v716, %v715
        %v720 = vsel %vm713, %v719, 0.0
        %v721 = vsel %vm714, %v718, 0.0
        %vm722 = vcmp.le.s32.totalorder %v707, 14
        %vm723 = vcmp.le.s32.totalorder %v708, 14
        %v724 = vrot.slane %v608, 1
        %v725 = vrot.slane %v611, 1
        %vm726 = vcmp.lt.s32.totalorder %v707, 7
        %v727 = vsel %vm726, %v724, %v725
        %v728 = vsel %vm726, %v725, %v724
        %v729 = vsel %vm722, %v727, 0.0
        %v730 = vsel %vm723, %v728, 0.0
        %v739 = vunpack.c.l.b16 %v615
        %v740 = vunpack.c.l.b16 %v616
        %v741 = vunpack.c.l.b16 %v617
        %v742 = vunpack.c.l.b16 %v618
        %v743 = vunpack.c.l.b16 %v619
        %v744 = vunpack.c.l.b16 %v620
        %v745 = vunpack.c.l.b16 %v621
        %v746 = vunpack.c.l.b16 %v622
        %v747 = vpack.c.b16 %v740, %v739
        %v748 = vpack.c.b16 %v742, %v741
        %v749 = vpack.c.b16 %v744, %v743
        %v750 = vpack.c.b16 %v746, %v745
        %755 = vmatprep.subr.bf16.mxu0 0
        %756 = vmatpush1.bf16.msra.mxu0 0
        %757 = vmatprep.subr.bf16.mxu0 0
        %758 = vmatpush1.bf16.msra.mxu0 0
        %759 = vmatprep.subr.bf16.mxu0 0
        %760 = vmatpush1.bf16.msra.mxu0 0
        %761 = vmatprep.subr.bf16.mxu0 0
        %762 = vmatpush1.bf16.msra.mxu0 0
        %763 = vmatprep.subr.bf16.mxu0 0
        %764 = vmatpush1.bf16.msra.mxu0 %v750
        %765 = vmatprep.subr.bf16.mxu0 0
        %766 = vmatpush1.bf16.msra.mxu0 %v749
        %767 = vmatprep.subr.bf16.mxu0 0
        %768 = vmatpush1.bf16.msra.mxu0 %v748
        %769 = vmatprep.subr.bf16.mxu0 0
        %770 = vmatpush1.bf16.msra.mxu0 %v747
        %771 = vmatprep.subr.bf16.mxu0 0
        %772 = vmatpush2.bf16.msra.mxu0 0
        %773 = vmatprep.subr.bf16.mxu0 0
        %774 = vmatpush2.bf16.msra.mxu0 0
        %775 = vmatprep.subr.bf16.mxu0 0
        %776 = vmatpush2.bf16.msra.mxu0 0
        %777 = vmatprep.subr.bf16.mxu0 0
        %778 = vmatpush2.bf16.msra.mxu0 0
        %779 = vmatprep.subr.bf16.mxu0 0
        %780 = vmatpush2.bf16.msra.mxu0 0
        %781 = vmatprep.subr.bf16.mxu0 0
        %782 = vmatpush2.bf16.msra.mxu0 0
        %783 = vmatprep.subr.bf16.mxu0 0
        %784 = vmatpush2.bf16.msra.mxu0 0
        %785 = vmatprep.subr.bf16.mxu0 0
        %786 = vmatpush2.bf16.msra.mxu0 0
        %787 = vmatprep.mubr.bf16.mxu0 0
        %788 = vmatmul.mubr.bf16.gmra.mxu0 %v571
        %v789 = vpop.f32.mrf.mxu0
        %v790 = vadd.f32 %v720, %v789
        %v791 = vpop.f32.mrf.mxu0
        %v792 = vpop.f32.mrf.mxu0
        %v793 = vadd.f32 %v721, %v792
        %v794 = vpop.f32.mrf.mxu0
        %795 = vdwg.mxu0
        %v804 = vunpack.c.l.b16 %v624
        %v805 = vunpack.c.l.b16 %v625
        %v806 = vunpack.c.l.b16 %v626
        %v807 = vunpack.c.l.b16 %v627
        %v808 = vunpack.c.l.b16 %v628
        %v809 = vunpack.c.l.b16 %v629
        %v810 = vunpack.c.l.b16 %v630
        %v811 = vunpack.c.l.b16 %v631
        %v812 = vpack.c.b16 %v805, %v804
        %v813 = vpack.c.b16 %v807, %v806
        %v814 = vpack.c.b16 %v809, %v808
        %v815 = vpack.c.b16 %v811, %v810
        %820 = vmatprep.subr.bf16.mxu0 0
        %821 = vmatpush1.bf16.msra.mxu0 0
        %822 = vmatprep.subr.bf16.mxu0 0
        %823 = vmatpush1.bf16.msra.mxu0 0
        %824 = vmatprep.subr.bf16.mxu0 0
        %825 = vmatpush1.bf16.msra.mxu0 0
        %826 = vmatprep.subr.bf16.mxu0 0
        %827 = vmatpush1.bf16.msra.mxu0 0
        %828 = vmatprep.subr.bf16.mxu0 0
        %829 = vmatpush1.bf16.msra.mxu0 %v815
        %830 = vmatprep.subr.bf16.mxu0 0
        %831 = vmatpush1.bf16.msra.mxu0 %v814
        %832 = vmatprep.subr.bf16.mxu0 0
        %833 = vmatpush1.bf16.msra.mxu0 %v813
        %834 = vmatprep.subr.bf16.mxu0 0
        %835 = vmatpush1.bf16.msra.mxu0 %v812
        %836 = vmatprep.subr.bf16.mxu0 0
        %837 = vmatpush2.bf16.msra.mxu0 0
        %838 = vmatprep.subr.bf16.mxu0 0
        %839 = vmatpush2.bf16.msra.mxu0 0
        %840 = vmatprep.subr.bf16.mxu0 0
        %841 = vmatpush2.bf16.msra.mxu0 0
        %842 = vmatprep.subr.bf16.mxu0 0
        %843 = vmatpush2.bf16.msra.mxu0 0
        %844 = vmatprep.subr.bf16.mxu0 0
        %845 = vmatpush2.bf16.msra.mxu0 0
        %846 = vmatprep.subr.bf16.mxu0 0
        %847 = vmatpush2.bf16.msra.mxu0 0
        %848 = vmatprep.subr.bf16.mxu0 0
        %849 = vmatpush2.bf16.msra.mxu0 0
        %850 = vmatprep.subr.bf16.mxu0 0
        %851 = vmatpush2.bf16.msra.mxu0 0
        %852 = vmatprep.mubr.bf16.mxu0 0
        %853 = vmatmul.mubr.bf16.gmra.mxu0 %v571
        %v854 = vpop.f32.mrf.mxu0
        %v855 = vadd.f32 %v729, %v854
        %v856 = vpop.f32.mrf.mxu0
        %v857 = vpop.f32.mrf.mxu0
        %v858 = vadd.f32 %v730, %v857
        %v859 = vpop.f32.mrf.mxu0
        %860 = vdwg.mxu0
        %v861 = vsel %vm711, %v790, %v855
        %v862 = vsel %vm712, %v793, %v858
        %v863 = vld [vmem:[%s4] sm:$0x1]
        %v865 = vlaneseq
        %v866 = vshrl.u32 %v865, 7
        %v867 = vsub.s32 0, %v866
        %v868 = vrot.slane %v863, %v867
        %v870 = vadd.f32 %v861, %v868
        %v871 = vadd.f32 %v862, %v868
        %874 = vrot.lane.b32.xlu0 %v530, 32
        %v875 = vpop.permute.xlu0 %874
        %876 = vrot.lane.b32.xlu0 %v531, 32
        %v877 = vpop.permute.xlu0 %876
        %vm880 = vcmask 261120
        %v881 = vsel %vm880, %v870, %v875
        %v882 = vsel %vm880, %v871, %v877
        %v883 = vpack.c.bf16 %v882, %v881
        %v884 = vld [vmem:[%s5] sm:$0xf]
        %v885 = vld [vmem:[%s5 + $0x4] sm:$0xf]
        %v886 = vld [vmem:[%s5 + $0x8] sm:$0xf]
        %v887 = vld [vmem:[%s5 + $0xc] sm:$0xf]
        %v888 = vld [vmem:[%s5 + $0x10] sm:$0xf]
        %v889 = vld [vmem:[%s5 + $0x14] sm:$0xf]
        %v890 = vld [vmem:[%s5 + $0x18] sm:$0xf]
        %v891 = vld [vmem:[%s5 + $0x1c] sm:$0xf]
        %v892 = vld [vmem:[%s5 + $0x20] sm:$0xf]
        %v893 = vld [vmem:[%s5 + $0x24] sm:$0xf]
        %v894 = vld [vmem:[%s5 + $0x28] sm:$0xf]
        %v895 = vld [vmem:[%s5 + $0x2c] sm:$0xf]
        %v896 = vld [vmem:[%s6] sm:$0x1]
        %v898 = vlaneseq
        %v899 = vshrl.u32 %v898, 7
        %v900 = vsub.s32 0, %v899
        %v901 = vrot.slane %v896, %v900
        %v915 = vunpack.c.l.b16 %v884
        %v916 = vunpack.c.l.b16 %v885
        %v917 = vunpack.c.l.b16 %v886
        %v918 = vunpack.c.l.b16 %v887
        %v919 = vunpack.c.l.b16 %v888
        %v920 = vunpack.c.l.b16 %v889
        %v921 = vunpack.c.l.b16 %v890
        %v922 = vunpack.c.l.b16 %v891
        %v923 = vunpack.c.l.b16 %v892
        %v924 = vunpack.c.l.b16 %v893
        %v925 = vunpack.c.l.b16 %v894
        %v926 = vunpack.c.l.b16 %v895
        %v927 = vpack.c.b16 %v916, %v915
        %v928 = vpack.c.b16 %v918, %v917
        %v929 = vpack.c.b16 %v920, %v919
        %v930 = vpack.c.b16 %v922, %v921
        %v931 = vpack.c.b16 %v924, %v923
        %v932 = vpack.c.b16 %v926, %v925
        %vm939 = vcmask 785408
        %v941 = vsel %vm939, %v883, 0
        %943 = vmatprep.subr.bf16.mxu0 0
        %944 = vmatpush1.bf16.msra.mxu0 0
        %945 = vmatprep.subr.bf16.mxu0 0
        %946 = vmatpush1.bf16.msra.mxu0 0
        %947 = vmatprep.subr.bf16.mxu0 0
        %948 = vmatpush1.bf16.msra.mxu0 %v932
        %949 = vmatprep.subr.bf16.mxu0 0
        %950 = vmatpush1.bf16.msra.mxu0 %v931
        %951 = vmatprep.subr.bf16.mxu0 0
        %952 = vmatpush1.bf16.msra.mxu0 %v930
        %953 = vmatprep.subr.bf16.mxu0 0
        %954 = vmatpush1.bf16.msra.mxu0 %v929
        %955 = vmatprep.subr.bf16.mxu0 0
        %956 = vmatpush1.bf16.msra.mxu0 %v928
        %957 = vmatprep.subr.bf16.mxu0 0
        %958 = vmatpush1.bf16.msra.mxu0 %v927
        %959 = vmatprep.subr.bf16.mxu0 0
        %960 = vmatpush2.bf16.msra.mxu0 0
        %961 = vmatprep.subr.bf16.mxu0 0
        %962 = vmatpush2.bf16.msra.mxu0 0
        %963 = vmatprep.subr.bf16.mxu0 0
        %964 = vmatpush2.bf16.msra.mxu0 0
        %965 = vmatprep.subr.bf16.mxu0 0
        %966 = vmatpush2.bf16.msra.mxu0 0
        %967 = vmatprep.subr.bf16.mxu0 0
        %968 = vmatpush2.bf16.msra.mxu0 0
        %969 = vmatprep.subr.bf16.mxu0 0
        %970 = vmatpush2.bf16.msra.mxu0 0
        %971 = vmatprep.subr.bf16.mxu0 0
        %972 = vmatpush2.bf16.msra.mxu0 0
        %973 = vmatprep.subr.bf16.mxu0 0
        %974 = vmatpush2.bf16.msra.mxu0 0
        %975 = vmatprep.mubr.bf16.mxu0 0
        %976 = vmatmul.mubr.bf16.gmra.mxu0 %v941
        %v977 = vpop.f32.mrf.mxu0
        %v978 = vadd.f32 %v901, %v977
        %v979 = vpop.f32.mrf.mxu0
        %v980 = vpop.f32.mrf.mxu0
        %v981 = vadd.f32 %v901, %v980
        %v982 = vpop.f32.mrf.mxu0
        %983 = vdwg.mxu0
        %v984 = vld [vmem:[%s7] sm:$0x1]
        %v985 = vld [vmem:[%s8] sm:$0x1]
        %v986 = vadd.s32 %v707, 16
        %v987 = vadd.s32 %v707, 24
        %v988 = vadd.s32 %v707, 32
        %v989 = vadd.s32 %v707, 40
        %v990 = vadd.s32 %v707, 48
        %v991 = vadd.s32 %v707, 56
        %v992 = vadd.s32 %v707, 64
        %v993 = vadd.s32 %v707, 72
        %v994 = vadd.s32 %v707, 80
        %v995 = vadd.s32 %v707, 88
        %v996 = vlaneseq
        %v997 = vand.u32 %v996, 127
        %v998 = vmul.u32 %v997, 12
        %vm999 = vcmp.ge.s32.totalorder %v707, %v998
        %vm1000 = vcmp.ge.s32.totalorder %v708, %v998
        %vm1001 = vcmp.ge.s32.totalorder %v986, %v998
        %vm1002 = vcmp.ge.s32.totalorder %v987, %v998
        %vm1003 = vcmp.ge.s32.totalorder %v988, %v998
        %vm1004 = vcmp.ge.s32.totalorder %v989, %v998
        %vm1005 = vcmp.ge.s32.totalorder %v990, %v998
        %vm1006 = vcmp.ge.s32.totalorder %v991, %v998
        %vm1007 = vcmp.ge.s32.totalorder %v992, %v998
        %vm1008 = vcmp.ge.s32.totalorder %v993, %v998
        %vm1009 = vcmp.ge.s32.totalorder %v994, %v998
        %vm1010 = vcmp.ge.s32.totalorder %v995, %v998
        %v1011 = vadd.s32 %v997, 1
        %v1012 = vmul.u32 %v1011, 12
        %vm1013 = vcmp.lt.s32.totalorder %v707, %v1012
        %vm1014 = vcmp.lt.s32.totalorder %v708, %v1012
        %vm1015 = vcmp.lt.s32.totalorder %v986, %v1012
        %vm1016 = vcmp.lt.s32.totalorder %v987, %v1012
        %vm1017 = vcmp.lt.s32.totalorder %v988, %v1012
        %vm1018 = vcmp.lt.s32.totalorder %v989, %v1012
        %vm1019 = vcmp.lt.s32.totalorder %v990, %v1012
        %vm1020 = vcmp.lt.s32.totalorder %v991, %v1012
        %vm1021 = vcmp.lt.s32.totalorder %v992, %v1012
        %vm1022 = vcmp.lt.s32.totalorder %v993, %v1012
        %vm1023 = vcmp.lt.s32.totalorder %v994, %v1012
        %vm1024 = vcmp.lt.s32.totalorder %v995, %v1012
        %vm1025 = vmand %vm999, %vm1013
        %vm1026 = vmand %vm1000, %vm1014
        %vm1027 = vmand %vm1001, %vm1015
        %vm1028 = vmand %vm1002, %vm1016
        %vm1029 = vmand %vm1003, %vm1017
        %vm1030 = vmand %vm1004, %vm1018
        %vm1031 = vmand %vm1005, %vm1019
        %vm1032 = vmand %vm1006, %vm1020
        %vm1033 = vmand %vm1007, %vm1021
        %vm1034 = vmand %vm1008, %vm1022
        %vm1035 = vmand %vm1009, %vm1023
        %vm1036 = vmand %vm1010, %vm1024
        %v1037 = vsel %vm1025, 1, 0
        %v1038 = vsel %vm1026, 1, 0
        %v1039 = vsel %vm1027, 1, 0
        %v1040 = vsel %vm1028, 1, 0
        %v1041 = vsel %vm1029, 1, 0
        %v1042 = vsel %vm1030, 1, 0
        %v1043 = vsel %vm1031, 1, 0
        %v1044 = vsel %vm1032, 1, 0
        %v1045 = vsel %vm1033, 1, 0
        %v1046 = vsel %vm1034, 1, 0
        %v1047 = vsel %vm1035, 1, 0
        %v1048 = vsel %vm1036, 1, 0
        %v1049 = vcvt.s32.f32 %v1037
        %v1050 = vcvt.s32.f32 %v1038
        %v1051 = vcvt.s32.f32 %v1039
        %v1052 = vcvt.s32.f32 %v1040
        %v1053 = vcvt.s32.f32 %v1041
        %v1054 = vcvt.s32.f32 %v1042
        %v1055 = vcvt.s32.f32 %v1043
        %v1056 = vcvt.s32.f32 %v1044
        %v1057 = vcvt.s32.f32 %v1045
        %v1058 = vcvt.s32.f32 %v1046
        %v1059 = vcvt.s32.f32 %v1047
        %v1060 = vcvt.s32.f32 %v1048
        %v1061 = vmul.u32 %v707, 12
        %vm1062 = vcmp.ge.s32.totalorder %v997, %v1061
        %v1063 = vadd.s32 %v707, 1
        %v1064 = vmul.u32 %v1063, 12
        %vm1065 = vcmp.lt.s32.totalorder %v997, %v1064
        %vm1066 = vmand %vm1062, %vm1065
        %v1067 = vsel %vm1066, 1, 0
        %v1068 = vcvt.s32.f32 %v1067
        %v1069 = vsel %vm939, %v881, 0.0
        %v1070 = vsel %vm939, %v882, 0.0
        %v1071 = vadd.f32 %v1069, %v1070
        %v1072 = vrot.slane %v1071, 4
        %v1073 = vadd.f32 %v1071, %v1072
        %v1074 = vrot.slane %v1073, 2
        %v1075 = vadd.f32 %v1073, %v1074
        %v1076 = vrot.slane %v1075, 1
        %v1077 = vadd.f32 %v1075, %v1076
        %v1079 = vsel %vm939, %v1077, 0
        %1081 = vmatprep.subr.mxu0 0.0
        %1082 = vmatpush1.msra.mxu0 0.0
        %1083 = vmatprep.subr.mxu0 0.0
        %1084 = vmatpush1.msra.mxu0 0.0
        %1085 = vmatprep.subr.mxu0 0.0
        %1086 = vmatpush1.msra.mxu0 0.0
        %1087 = vmatprep.subr.mxu0 0.0
        %1088 = vmatpush1.msra.mxu0 0.0
        %1089 = vmatprep.subr.mxu0 0.0
        %1090 = vmatpush1.msra.mxu0 %v1060
        %1091 = vmatprep.subr.mxu0 0.0
        %1092 = vmatpush1.msra.mxu0 %v1059
        %1093 = vmatprep.subr.mxu0 0.0
        %1094 = vmatpush1.msra.mxu0 %v1058
        %1095 = vmatprep.subr.mxu0 0.0
        %1096 = vmatpush1.msra.mxu0 %v1057
        %1097 = vmatprep.subr.mxu0 0.0
        %1098 = vmatpush1.msra.mxu0 %v1056
        %1099 = vmatprep.subr.mxu0 0.0
        %1100 = vmatpush1.msra.mxu0 %v1055
        %1101 = vmatprep.subr.mxu0 0.0
        %1102 = vmatpush1.msra.mxu0 %v1054
        %1103 = vmatprep.subr.mxu0 0.0
        %1104 = vmatpush1.msra.mxu0 %v1053
        %1105 = vmatprep.subr.mxu0 0.0
        %1106 = vmatpush1.msra.mxu0 %v1052
        %1107 = vmatprep.subr.mxu0 0.0
        %1108 = vmatpush1.msra.mxu0 %v1051
        %1109 = vmatprep.subr.mxu0 0.0
        %1110 = vmatpush1.msra.mxu0 %v1050
        %1111 = vmatprep.subr.mxu0 0.0
        %1112 = vmatpush1.msra.mxu0 %v1049
        %1113 = vmatprep.subr.mxu0 0.0
        %1114 = vmatpush2.msra.mxu0 0.0
        %1115 = vmatprep.subr.mxu0 0.0
        %1116 = vmatpush2.msra.mxu0 0.0
        %1117 = vmatprep.subr.mxu0 0.0
        %1118 = vmatpush2.msra.mxu0 0.0
        %1119 = vmatprep.subr.mxu0 0.0
        %1120 = vmatpush2.msra.mxu0 0.0
        %1121 = vmatprep.subr.mxu0 0.0
        %1122 = vmatpush2.msra.mxu0 0.0
        %1123 = vmatprep.subr.mxu0 0.0
        %1124 = vmatpush2.msra.mxu0 0.0
        %1125 = vmatprep.subr.mxu0 0.0
        %1126 = vmatpush2.msra.mxu0 0.0
        %1127 = vmatprep.subr.mxu0 0.0
        %1128 = vmatpush2.msra.mxu0 0.0
        %1129 = vmatprep.subr.mxu0 0.0
        %1130 = vmatpush2.msra.mxu0 0.0
        %1131 = vmatprep.subr.mxu0 0.0
        %1132 = vmatpush2.msra.mxu0 0.0
        %1133 = vmatprep.subr.mxu0 0.0
        %1134 = vmatpush2.msra.mxu0 0.0
        %1135 = vmatprep.subr.mxu0 0.0
        %1136 = vmatpush2.msra.mxu0 0.0
        %1137 = vmatprep.subr.mxu0 0.0
        %1138 = vmatpush2.msra.mxu0 0.0
        %1139 = vmatprep.subr.mxu0 0.0
        %1140 = vmatpush2.msra.mxu0 0.0
        %1141 = vmatprep.subr.mxu0 0.0
        %1142 = vmatpush2.msra.mxu0 0.0
        %1143 = vmatprep.subr.mxu0 0.0
        %1144 = vmatpush2.msra.mxu0 0.0
        %1145 = vmatprep.mubr.f32.mxu0 0.0
        %1146 = vmatmul.mubr.f32.gmra.mxu0 %v1079
        %v1147 = vpop.f32.mrf.mxu0
        %v1148 = vadd.f32 0.0, %v1147
        %v1149 = vpop.f32.mrf.mxu0
        %1150 = vdwg.mxu0
        %v1151 = vrcp.pop 192.0
        %v1152 = vmul.f32 %v1148, %v1151
        %vm1153 = vcmask 64512
        %v1155 = vsel %vm1153, %v1152, 0
        %1157 = vmatprep.subr.mxu0 0.0
        %1158 = vmatpush1.msra.mxu0 0.0
        %1159 = vmatprep.subr.mxu0 0.0
        %1160 = vmatpush1.msra.mxu0 0.0
        %1161 = vmatprep.subr.mxu0 0.0
        %1162 = vmatpush1.msra.mxu0 0.0
        %1163 = vmatprep.subr.mxu0 0.0
        %1164 = vmatpush1.msra.mxu0 0.0
        %1165 = vmatprep.subr.mxu0 0.0
        %1166 = vmatpush1.msra.mxu0 0.0
        %1167 = vmatprep.subr.mxu0 0.0
        %1168 = vmatpush1.msra.mxu0 0.0
        %1169 = vmatprep.subr.mxu0 0.0
        %1170 = vmatpush1.msra.mxu0 0.0
        %1171 = vmatprep.subr.mxu0 0.0
        %1172 = vmatpush1.msra.mxu0 0.0
        %1173 = vmatprep.subr.mxu0 0.0
        %1174 = vmatpush1.msra.mxu0 0.0
        %1175 = vmatprep.subr.mxu0 0.0
        %1176 = vmatpush1.msra.mxu0 0.0
        %1177 = vmatprep.subr.mxu0 0.0
        %1178 = vmatpush1.msra.mxu0 0.0
        %1179 = vmatprep.subr.mxu0 0.0
        %1180 = vmatpush1.msra.mxu0 0.0
        %1181 = vmatprep.subr.mxu0 0.0
        %1182 = vmatpush1.msra.mxu0 0.0
        %1183 = vmatprep.subr.mxu0 0.0
        %1184 = vmatpush1.msra.mxu0 0.0
        %1185 = vmatprep.subr.mxu0 0.0
        %1186 = vmatpush1.msra.mxu0 0.0
        %1187 = vmatprep.subr.mxu0 0.0
        %1188 = vmatpush1.msra.mxu0 %v1068
        %1189 = vmatprep.subr.mxu0 0.0
        %1190 = vmatpush2.msra.mxu0 0.0
        %1191 = vmatprep.subr.mxu0 0.0
        %1192 = vmatpush2.msra.mxu0 0.0
        %1193 = vmatprep.subr.mxu0 0.0
        %1194 = vmatpush2.msra.mxu0 0.0
        %1195 = vmatprep.subr.mxu0 0.0
        %1196 = vmatpush2.msra.mxu0 0.0
        %1197 = vmatprep.subr.mxu0 0.0
        %1198 = vmatpush2.msra.mxu0 0.0
        %1199 = vmatprep.subr.mxu0 0.0
        %1200 = vmatpush2.msra.mxu0 0.0
        %1201 = vmatprep.subr.mxu0 0.0
        %1202 = vmatpush2.msra.mxu0 0.0
        %1203 = vmatprep.subr.mxu0 0.0
        %1204 = vmatpush2.msra.mxu0 0.0
        %1205 = vmatprep.subr.mxu0 0.0
        %1206 = vmatpush2.msra.mxu0 0.0
        %1207 = vmatprep.subr.mxu0 0.0
        %1208 = vmatpush2.msra.mxu0 0.0
        %1209 = vmatprep.subr.mxu0 0.0
        %1210 = vmatpush2.msra.mxu0 0.0
        %1211 = vmatprep.subr.mxu0 0.0
        %1212 = vmatpush2.msra.mxu0 0.0
        %1213 = vmatprep.subr.mxu0 0.0
        %1214 = vmatpush2.msra.mxu0 0.0
        %1215 = vmatprep.subr.mxu0 0.0
        %1216 = vmatpush2.msra.mxu0 0.0
        %1217 = vmatprep.subr.mxu0 0.0
        %1218 = vmatpush2.msra.mxu0 0.0
        %1219 = vmatprep.subr.mxu0 0.0
        %1220 = vmatpush2.msra.mxu0 0.0
        %1221 = vmatprep.mubr.f32.mxu0 0.0
        %1222 = vmatmul.mubr.f32.gmra.mxu0 %v1155
        %v1223 = vpop.f32.mrf.mxu0
        %v1224 = vadd.f32 0.0, %v1223
        %v1225 = vpop.f32.mrf.mxu0
        %1226 = vdwg.mxu0
        %v1227 = vlaneseq
        %v1228 = vshrl.u32 %v1227, 7
        %v1229 = vsub.s32 0, %v1228
        %v1230 = vrot.slane %v1224, %v1229
        %v1231 = vsub.f32 %v881, %v1230
        %v1232 = vsub.f32 %v882, %v1230
        %v1233 = vmul.f32 %v1231, %v1231
        %v1234 = vmul.f32 %v1232, %v1232
        %v1235 = vsel %vm939, %v1233, 0.0
        %v1236 = vsel %vm939, %v1234, 0.0
        %v1237 = vadd.f32 %v1235, %v1236
        %v1238 = vrot.slane %v1237, 4
        %v1239 = vadd.f32 %v1237, %v1238
        %v1240 = vrot.slane %v1239, 2
        %v1241 = vadd.f32 %v1239, %v1240
        %v1242 = vrot.slane %v1241, 1
        %v1243 = vadd.f32 %v1241, %v1242
        %v1245 = vsel %vm939, %v1243, 0
        %1247 = vmatprep.subr.mxu0 0.0
        %1248 = vmatpush1.msra.mxu0 0.0
        %1249 = vmatprep.subr.mxu0 0.0
        %1250 = vmatpush1.msra.mxu0 0.0
        %1251 = vmatprep.subr.mxu0 0.0
        %1252 = vmatpush1.msra.mxu0 0.0
        %1253 = vmatprep.subr.mxu0 0.0
        %1254 = vmatpush1.msra.mxu0 0.0
        %1255 = vmatprep.subr.mxu0 0.0
        %1256 = vmatpush1.msra.mxu0 %v1060
        %1257 = vmatprep.subr.mxu0 0.0
        %1258 = vmatpush1.msra.mxu0 %v1059
        %1259 = vmatprep.subr.mxu0 0.0
        %1260 = vmatpush1.msra.mxu0 %v1058
        %1261 = vmatprep.subr.mxu0 0.0
        %1262 = vmatpush1.msra.mxu0 %v1057
        %1263 = vmatprep.subr.mxu0 0.0
        %1264 = vmatpush1.msra.mxu0 %v1056
        %1265 = vmatprep.subr.mxu0 0.0
        %1266 = vmatpush1.msra.mxu0 %v1055
        %1267 = vmatprep.subr.mxu0 0.0
        %1268 = vmatpush1.msra.mxu0 %v1054
        %1269 = vmatprep.subr.mxu0 0.0
        %1270 = vmatpush1.msra.mxu0 %v1053
        %1271 = vmatprep.subr.mxu0 0.0
        %1272 = vmatpush1.msra.mxu0 %v1052
        %1273 = vmatprep.subr.mxu0 0.0
        %1274 = vmatpush1.msra.mxu0 %v1051
        %1275 = vmatprep.subr.mxu0 0.0
        %1276 = vmatpush1.msra.mxu0 %v1050
        %1277 = vmatprep.subr.mxu0 0.0
        %1278 = vmatpush1.msra.mxu0 %v1049
        %1279 = vmatprep.subr.mxu0 0.0
        %1280 = vmatpush2.msra.mxu0 0.0
        %1281 = vmatprep.subr.mxu0 0.0
        %1282 = vmatpush2.msra.mxu0 0.0
        %1283 = vmatprep.subr.mxu0 0.0
        %1284 = vmatpush2.msra.mxu0 0.0
        %1285 = vmatprep.subr.mxu0 0.0
        %1286 = vmatpush2.msra.mxu0 0.0
        %1287 = vmatprep.subr.mxu0 0.0
        %1288 = vmatpush2.msra.mxu0 0.0
        %1289 = vmatprep.subr.mxu0 0.0
        %1290 = vmatpush2.msra.mxu0 0.0
        %1291 = vmatprep.subr.mxu0 0.0
        %1292 = vmatpush2.msra.mxu0 0.0
        %1293 = vmatprep.subr.mxu0 0.0
        %1294 = vmatpush2.msra.mxu0 0.0
        %1295 = vmatprep.subr.mxu0 0.0
        %1296 = vmatpush2.msra.mxu0 0.0
        %1297 = vmatprep.subr.mxu0 0.0
        %1298 = vmatpush2.msra.mxu0 0.0
        %1299 = vmatprep.subr.mxu0 0.0
        %1300 = vmatpush2.msra.mxu0 0.0
        %1301 = vmatprep.subr.mxu0 0.0
        %1302 = vmatpush2.msra.mxu0 0.0
        %1303 = vmatprep.subr.mxu0 0.0
        %1304 = vmatpush2.msra.mxu0 0.0
        %1305 = vmatprep.subr.mxu0 0.0
        %1306 = vmatpush2.msra.mxu0 0.0
        %1307 = vmatprep.subr.mxu0 0.0
        %1308 = vmatpush2.msra.mxu0 0.0
        %1309 = vmatprep.subr.mxu0 0.0
        %1310 = vmatpush2.msra.mxu0 0.0
        %1311 = vmatprep.mubr.f32.mxu0 0.0
        %1312 = vmatmul.mubr.f32.gmra.mxu0 %v1245
        %v1313 = vpop.f32.mrf.mxu0
        %v1314 = vadd.f32 0.0, %v1313
        %v1315 = vpop.f32.mrf.mxu0
        %1316 = vdwg.mxu0
        %v1317 = vmul.f32 %v1314, %v1151
        %v1318 = vadd.f32 %v1317, 1e-05
        %v1319 = vrsqrt.pop %v1318
        %v1321 = vsel %vm1153, %v1319, 0
        %1323 = vmatprep.subr.mxu0 0.0
        %1324 = vmatpush1.msra.mxu0 0.0
        %1325 = vmatprep.subr.mxu0 0.0
        %1326 = vmatpush1.msra.mxu0 0.0
        %1327 = vmatprep.subr.mxu0 0.0
        %1328 = vmatpush1.msra.mxu0 0.0
        %1329 = vmatprep.subr.mxu0 0.0
        %1330 = vmatpush1.msra.mxu0 0.0
        %1331 = vmatprep.subr.mxu0 0.0
        %1332 = vmatpush1.msra.mxu0 0.0
        %1333 = vmatprep.subr.mxu0 0.0
        %1334 = vmatpush1.msra.mxu0 0.0
        %1335 = vmatprep.subr.mxu0 0.0
        %1336 = vmatpush1.msra.mxu0 0.0
        %1337 = vmatprep.subr.mxu0 0.0
        %1338 = vmatpush1.msra.mxu0 0.0
        %1339 = vmatprep.subr.mxu0 0.0
        %1340 = vmatpush1.msra.mxu0 0.0
        %1341 = vmatprep.subr.mxu0 0.0
        %1342 = vmatpush1.msra.mxu0 0.0
        %1343 = vmatprep.subr.mxu0 0.0
        %1344 = vmatpush1.msra.mxu0 0.0
        %1345 = vmatprep.subr.mxu0 0.0
        %1346 = vmatpush1.msra.mxu0 0.0
        %1347 = vmatprep.subr.mxu0 0.0
        %1348 = vmatpush1.msra.mxu0 0.0
        %1349 = vmatprep.subr.mxu0 0.0
        %1350 = vmatpush1.msra.mxu0 0.0
        %1351 = vmatprep.subr.mxu0 0.0
        %1352 = vmatpush1.msra.mxu0 0.0
        %1353 = vmatprep.subr.mxu0 0.0
        %1354 = vmatpush1.msra.mxu0 %v1068
        %1355 = vmatprep.subr.mxu0 0.0
        %1356 = vmatpush2.msra.mxu0 0.0
        %1357 = vmatprep.subr.mxu0 0.0
        %1358 = vmatpush2.msra.mxu0 0.0
        %1359 = vmatprep.subr.mxu0 0.0
        %1360 = vmatpush2.msra.mxu0 0.0
        %1361 = vmatprep.subr.mxu0 0.0
        %1362 = vmatpush2.msra.mxu0 0.0
        %1363 = vmatprep.subr.mxu0 0.0
        %1364 = vmatpush2.msra.mxu0 0.0
        %1365 = vmatprep.subr.mxu0 0.0
        %1366 = vmatpush2.msra.mxu0 0.0
        %1367 = vmatprep.subr.mxu0 0.0
        %1368 = vmatpush2.msra.mxu0 0.0
        %1369 = vmatprep.subr.mxu0 0.0
        %1370 = vmatpush2.msra.mxu0 0.0
        %1371 = vmatprep.subr.mxu0 0.0
        %1372 = vmatpush2.msra.mxu0 0.0
        %1373 = vmatprep.subr.mxu0 0.0
        %1374 = vmatpush2.msra.mxu0 0.0
        %1375 = vmatprep.subr.mxu0 0.0
        %1376 = vmatpush2.msra.mxu0 0.0
        %1377 = vmatprep.subr.mxu0 0.0
        %1378 = vmatpush2.msra.mxu0 0.0
        %1379 = vmatprep.subr.mxu0 0.0
        %1380 = vmatpush2.msra.mxu0 0.0
        %1381 = vmatprep.subr.mxu0 0.0
        %1382 = vmatpush2.msra.mxu0 0.0
        %1383 = vmatprep.subr.mxu0 0.0
        %1384 = vmatpush2.msra.mxu0 0.0
        %1385 = vmatprep.subr.mxu0 0.0
        %1386 = vmatpush2.msra.mxu0 0.0
        %1387 = vmatprep.mubr.f32.mxu0 0.0
        %1388 = vmatmul.mubr.f32.gmra.mxu0 %v1321
        %v1389 = vpop.f32.mrf.mxu0
        %v1390 = vadd.f32 0.0, %v1389
        %v1391 = vpop.f32.mrf.mxu0
        %1392 = vdwg.mxu0
        %v1393 = vlaneseq
        %v1394 = vshrl.u32 %v1393, 7
        %v1395 = vsub.s32 0, %v1394
        %v1396 = vrot.slane %v1390, %v1395
        %v1397 = vmul.f32 %v1231, %v1396
        %v1398 = vmul.f32 %v1232, %v1396
        %v1400 = vlaneseq
        %v1401 = vshrl.u32 %v1400, 7
        %v1402 = vsub.s32 0, %v1401
        %v1403 = vrot.slane %v984, %v1402
        %v1405 = vmul.f32 %v1397, %v1403
        %v1406 = vmul.f32 %v1398, %v1403
        %v1408 = vlaneseq
        %v1409 = vshrl.u32 %v1408, 7
        %v1410 = vsub.s32 0, %v1409
        %v1411 = vrot.slane %v985, %v1410
        %v1413 = vadd.f32 %v1405, %v1411
        %v1414 = vadd.f32 %v1406, %v1411
        %v1415 = vxor.u32 %v1413, 2147483648
        %v1416 = vxor.u32 %v1414, 2147483648
        %v1417 = vmul.f32 %v1415, 1.442695
        %v1418 = vpow.pop %v1417
        %v1419 = vmul.f32 %v1416, 1.442695
        %v1420 = vpow.pop %v1419
        %v1421 = vadd.f32 %v1418, 1.0
        %v1422 = vadd.f32 %v1420, 1.0
        %v1423 = vrcp.pop %v1421
        %v1424 = vmul.f32 1.0, %v1423
        %v1425 = vrcp.pop %v1422
        %v1426 = vmul.f32 1.0, %v1425
        %v1427 = vmul.f32 %v1413, %v1424
        %v1428 = vmul.f32 %v1414, %v1426
        %v1429 = vpack.c.bf16 %v1428, %v1427
        %v1430 = vld [vmem:[%s9] sm:$0xf]
        %v1431 = vld [vmem:[%s9 + $0x4] sm:$0xf]
        %v1432 = vld [vmem:[%s9 + $0x8] sm:$0xf]
        %v1433 = vld [vmem:[%s9 + $0xc] sm:$0xf]
        %v1434 = vld [vmem:[%s9 + $0x10] sm:$0xf]
        %v1435 = vld [vmem:[%s9 + $0x14] sm:$0xf]
        %v1436 = vld [vmem:[%s9 + $0x18] sm:$0xf]
        %v1437 = vld [vmem:[%s9 + $0x1c] sm:$0xf]
        %v1438 = vld [vmem:[%s9 + $0x20] sm:$0xf]
        %v1439 = vld [vmem:[%s9 + $0x24] sm:$0xf]
        %v1440 = vld [vmem:[%s9 + $0x28] sm:$0xf]
        %v1441 = vld [vmem:[%s9 + $0x2c] sm:$0xf]
        %v1454 = vunpack.c.l.b16 %v1430
        %v1455 = vunpack.c.l.b16 %v1431
        %v1456 = vunpack.c.l.b16 %v1432
        %v1457 = vunpack.c.l.b16 %v1433
        %v1458 = vunpack.c.l.b16 %v1434
        %v1459 = vunpack.c.l.b16 %v1435
        %v1460 = vunpack.c.l.b16 %v1436
        %v1461 = vunpack.c.l.b16 %v1437
        %v1462 = vunpack.c.l.b16 %v1438
        %v1463 = vunpack.c.l.b16 %v1439
        %v1464 = vunpack.c.l.b16 %v1440
        %v1465 = vunpack.c.l.b16 %v1441
        %v1466 = vpack.c.b16 %v1455, %v1454
        %v1467 = vpack.c.b16 %v1457, %v1456
        %v1468 = vpack.c.b16 %v1459, %v1458
        %v1469 = vpack.c.b16 %v1461, %v1460
        %v1470 = vpack.c.b16 %v1463, %v1462
        %v1471 = vpack.c.b16 %v1465, %v1464
        %v1479 = vsel %vm939, %v1429, 0
        %1481 = vmatprep.subr.bf16.mxu0 0
        %1482 = vmatpush1.bf16.msra.mxu0 0
        %1483 = vmatprep.subr.bf16.mxu0 0
        %1484 = vmatpush1.bf16.msra.mxu0 0
        %1485 = vmatprep.subr.bf16.mxu0 0
        %1486 = vmatpush1.bf16.msra.mxu0 %v1471
        %1487 = vmatprep.subr.bf16.mxu0 0
        %1488 = vmatpush1.bf16.msra.mxu0 %v1470
        %1489 = vmatprep.subr.bf16.mxu0 0
        %1490 = vmatpush1.bf16.msra.mxu0 %v1469
        %1491 = vmatprep.subr.bf16.mxu0 0
        %1492 = vmatpush1.bf16.msra.mxu0 %v1468
        %1493 = vmatprep.subr.bf16.mxu0 0
        %1494 = vmatpush1.bf16.msra.mxu0 %v1467
        %1495 = vmatprep.subr.bf16.mxu0 0
        %1496 = vmatpush1.bf16.msra.mxu0 %v1466
        %1497 = vmatprep.subr.bf16.mxu0 0
        %1498 = vmatpush2.bf16.msra.mxu0 0
        %1499 = vmatprep.subr.bf16.mxu0 0
        %1500 = vmatpush2.bf16.msra.mxu0 0
        %1501 = vmatprep.subr.bf16.mxu0 0
        %1502 = vmatpush2.bf16.msra.mxu0 0
        %1503 = vmatprep.subr.bf16.mxu0 0
        %1504 = vmatpush2.bf16.msra.mxu0 0
        %1505 = vmatprep.subr.bf16.mxu0 0
        %1506 = vmatpush2.bf16.msra.mxu0 0
        %1507 = vmatprep.subr.bf16.mxu0 0
        %1508 = vmatpush2.bf16.msra.mxu0 0
        %1509 = vmatprep.subr.bf16.mxu0 0
        %1510 = vmatpush2.bf16.msra.mxu0 0
        %1511 = vmatprep.subr.bf16.mxu0 0
        %1512 = vmatpush2.bf16.msra.mxu0 0
        %1513 = vmatprep.mubr.bf16.mxu0 0
        %1514 = vmatmul.mubr.bf16.gmra.mxu0 %v1479
        %v1515 = vpop.f32.mrf.mxu0
        %v1516 = vadd.f32 0.0, %v1515
        %v1517 = vpop.f32.mrf.mxu0
        %v1518 = vpop.f32.mrf.mxu0
        %v1519 = vadd.f32 0.0, %v1518
        %v1520 = vpop.f32.mrf.mxu0
        %1521 = vdwg.mxu0
        %s1522 = scalar_lea.vmem %s9, 48
        %v1523 = vld [vmem:[%s1522] sm:$0xf]
        %v1524 = vld [vmem:[%s1522 + $0x4] sm:$0xf]
        %v1525 = vld [vmem:[%s1522 + $0x8] sm:$0xf]
        %v1526 = vld [vmem:[%s1522 + $0xc] sm:$0xf]
        %v1527 = vld [vmem:[%s1522 + $0x10] sm:$0xf]
        %v1528 = vld [vmem:[%s1522 + $0x14] sm:$0xf]
        %v1529 = vld [vmem:[%s1522 + $0x18] sm:$0xf]
        %v1530 = vld [vmem:[%s1522 + $0x1c] sm:$0xf]
        %v1531 = vld [vmem:[%s1522 + $0x20] sm:$0xf]
        %v1532 = vld [vmem:[%s1522 + $0x24] sm:$0xf]
        %v1533 = vld [vmem:[%s1522 + $0x28] sm:$0xf]
        %v1534 = vld [vmem:[%s1522 + $0x2c] sm:$0xf]
        %v1547 = vunpack.c.l.b16 %v1523
        %v1548 = vunpack.c.l.b16 %v1524
        %v1549 = vunpack.c.l.b16 %v1525
        %v1550 = vunpack.c.l.b16 %v1526
        %v1551 = vunpack.c.l.b16 %v1527
        %v1552 = vunpack.c.l.b16 %v1528
        %v1553 = vunpack.c.l.b16 %v1529
        %v1554 = vunpack.c.l.b16 %v1530
        %v1555 = vunpack.c.l.b16 %v1531
        %v1556 = vunpack.c.l.b16 %v1532
        %v1557 = vunpack.c.l.b16 %v1533
        %v1558 = vunpack.c.l.b16 %v1534
        %v1559 = vpack.c.b16 %v1548, %v1547
        %v1560 = vpack.c.b16 %v1550, %v1549
        %v1561 = vpack.c.b16 %v1552, %v1551
        %v1562 = vpack.c.b16 %v1554, %v1553
        %v1563 = vpack.c.b16 %v1556, %v1555
        %v1564 = vpack.c.b16 %v1558, %v1557
        %1571 = vmatprep.subr.bf16.mxu0 0
        %1572 = vmatpush1.bf16.msra.mxu0 0
        %1573 = vmatprep.subr.bf16.mxu0 0
        %1574 = vmatpush1.bf16.msra.mxu0 0
        %1575 = vmatprep.subr.bf16.mxu0 0
        %1576 = vmatpush1.bf16.msra.mxu0 %v1564
        %1577 = vmatprep.subr.bf16.mxu0 0
        %1578 = vmatpush1.bf16.msra.mxu0 %v1563
        %1579 = vmatprep.subr.bf16.mxu0 0
        %1580 = vmatpush1.bf16.msra.mxu0 %v1562
        %1581 = vmatprep.subr.bf16.mxu0 0
        %1582 = vmatpush1.bf16.msra.mxu0 %v1561
        %1583 = vmatprep.subr.bf16.mxu0 0
        %1584 = vmatpush1.bf16.msra.mxu0 %v1560
        %1585 = vmatprep.subr.bf16.mxu0 0
        %1586 = vmatpush1.bf16.msra.mxu0 %v1559
        %1587 = vmatprep.subr.bf16.mxu0 0
        %1588 = vmatpush2.bf16.msra.mxu0 0
        %1589 = vmatprep.subr.bf16.mxu0 0
        %1590 = vmatpush2.bf16.msra.mxu0 0
        %1591 = vmatprep.subr.bf16.mxu0 0
        %1592 = vmatpush2.bf16.msra.mxu0 0
        %1593 = vmatprep.subr.bf16.mxu0 0
        %1594 = vmatpush2.bf16.msra.mxu0 0
        %1595 = vmatprep.subr.bf16.mxu0 0
        %1596 = vmatpush2.bf16.msra.mxu0 0
        %1597 = vmatprep.subr.bf16.mxu0 0
        %1598 = vmatpush2.bf16.msra.mxu0 0
        %1599 = vmatprep.subr.bf16.mxu0 0
        %1600 = vmatpush2.bf16.msra.mxu0 0
        %1601 = vmatprep.subr.bf16.mxu0 0
        %1602 = vmatpush2.bf16.msra.mxu0 0
        %1603 = vmatprep.mubr.bf16.mxu0 0
        %1604 = vmatmul.mubr.bf16.gmra.mxu0 %v1479
        %v1605 = vpop.f32.mrf.mxu0
        %v1606 = vadd.f32 0.0, %v1605
        %v1607 = vpop.f32.mrf.mxu0
        %v1608 = vpop.f32.mrf.mxu0
        %v1609 = vadd.f32 0.0, %v1608
        %v1610 = vpop.f32.mrf.mxu0
        %1611 = vdwg.mxu0
        %s1612 = scalar_lea.vmem %s9, 96
        %v1613 = vld [vmem:[%s1612] sm:$0xf]
        %v1614 = vld [vmem:[%s1612 + $0x4] sm:$0xf]
        %v1615 = vld [vmem:[%s1612 + $0x8] sm:$0xf]
        %v1616 = vld [vmem:[%s1612 + $0xc] sm:$0xf]
        %v1617 = vld [vmem:[%s1612 + $0x10] sm:$0xf]
        %v1618 = vld [vmem:[%s1612 + $0x14] sm:$0xf]
        %v1619 = vld [vmem:[%s1612 + $0x18] sm:$0xf]
        %v1620 = vld [vmem:[%s1612 + $0x1c] sm:$0xf]
        %v1621 = vld [vmem:[%s1612 + $0x20] sm:$0xf]
        %v1622 = vld [vmem:[%s1612 + $0x24] sm:$0xf]
        %v1623 = vld [vmem:[%s1612 + $0x28] sm:$0xf]
        %v1624 = vld [vmem:[%s1612 + $0x2c] sm:$0xf]
        %v1637 = vunpack.c.l.b16 %v1613
        %v1638 = vunpack.c.l.b16 %v1614
        %v1639 = vunpack.c.l.b16 %v1615
        %v1640 = vunpack.c.l.b16 %v1616
        %v1641 = vunpack.c.l.b16 %v1617
        %v1642 = vunpack.c.l.b16 %v1618
        %v1643 = vunpack.c.l.b16 %v1619
        %v1644 = vunpack.c.l.b16 %v1620
        %v1645 = vunpack.c.l.b16 %v1621
        %v1646 = vunpack.c.l.b16 %v1622
        %v1647 = vunpack.c.l.b16 %v1623
        %v1648 = vunpack.c.l.b16 %v1624
        %v1649 = vpack.c.b16 %v1638, %v1637
        %v1650 = vpack.c.b16 %v1640, %v1639
        %v1651 = vpack.c.b16 %v1642, %v1641
        %v1652 = vpack.c.b16 %v1644, %v1643
        %v1653 = vpack.c.b16 %v1646, %v1645
        %v1654 = vpack.c.b16 %v1648, %v1647
        %1661 = vmatprep.subr.bf16.mxu0 0
        %1662 = vmatpush1.bf16.msra.mxu0 0
        %1663 = vmatprep.subr.bf16.mxu0 0
        %1664 = vmatpush1.bf16.msra.mxu0 0
        %1665 = vmatprep.subr.bf16.mxu0 0
        %1666 = vmatpush1.bf16.msra.mxu0 %v1654
        %1667 = vmatprep.subr.bf16.mxu0 0
        %1668 = vmatpush1.bf16.msra.mxu0 %v1653
        %1669 = vmatprep.subr.bf16.mxu0 0
        %1670 = vmatpush1.bf16.msra.mxu0 %v1652
        %1671 = vmatprep.subr.bf16.mxu0 0
        %1672 = vmatpush1.bf16.msra.mxu0 %v1651
        %1673 = vmatprep.subr.bf16.mxu0 0
        %1674 = vmatpush1.bf16.msra.mxu0 %v1650
        %1675 = vmatprep.subr.bf16.mxu0 0
        %1676 = vmatpush1.bf16.msra.mxu0 %v1649
        %1677 = vmatprep.subr.bf16.mxu0 0
        %1678 = vmatpush2.bf16.msra.mxu0 0
        %1679 = vmatprep.subr.bf16.mxu0 0
        %1680 = vmatpush2.bf16.msra.mxu0 0
        %1681 = vmatprep.subr.bf16.mxu0 0
        %1682 = vmatpush2.bf16.msra.mxu0 0
        %1683 = vmatprep.subr.bf16.mxu0 0
        %1684 = vmatpush2.bf16.msra.mxu0 0
        %1685 = vmatprep.subr.bf16.mxu0 0
        %1686 = vmatpush2.bf16.msra.mxu0 0
        %1687 = vmatprep.subr.bf16.mxu0 0
        %1688 = vmatpush2.bf16.msra.mxu0 0
        %1689 = vmatprep.subr.bf16.mxu0 0
        %1690 = vmatpush2.bf16.msra.mxu0 0
        %1691 = vmatprep.subr.bf16.mxu0 0
        %1692 = vmatpush2.bf16.msra.mxu0 0
        %1693 = vmatprep.mubr.bf16.mxu0 0
        %1694 = vmatmul.mubr.bf16.gmra.mxu0 %v1479
        %v1695 = vpop.f32.mrf.mxu0
        %v1696 = vadd.f32 0.0, %v1695
        %v1697 = vpop.f32.mrf.mxu0
        %v1698 = vpop.f32.mrf.mxu0
        %v1699 = vadd.f32 0.0, %v1698
        %v1700 = vpop.f32.mrf.mxu0
        %1701 = vdwg.mxu0
        %vm1702 = vcmp.ge.s32.totalorder %v707, 1
        %vm1703 = vcmp.ge.s32.totalorder %v708, 1
        %v1704 = vrot.slane %v1516, 7
        %v1705 = vrot.slane %v1519, 7
        %vm1706 = vcmp.lt.s32.totalorder %v707, 1
        %v1707 = vsel %vm1706, %v1704, %v1705
        %v1708 = vsel %vm1706, %v1705, %v1704
        %v1709 = vsel %vm1702, %v1708, 0.0
        %v1710 = vsel %vm1703, %v1707, 0.0
        %v1711 = vrot.slane %v1696, 1
        %v1712 = vrot.slane %v1699, 1
        %v1713 = vsel %vm726, %v1711, %v1712
        %v1714 = vsel %vm726, %v1712, %v1711
        %v1715 = vsel %vm722, %v1713, 0.0
        %v1716 = vsel %vm723, %v1714, 0.0
        %v1717 = vadd.f32 %v1709, %v1606
        %v1718 = vadd.f32 %v1710, %v1609
        %v1719 = vadd.f32 %v1717, %v1715
        %v1720 = vadd.f32 %v1718, %v1716
        %v1721 = vld [vmem:[%s10] sm:$0x1]
        %v1723 = vlaneseq
        %v1724 = vshrl.u32 %v1723, 7
        %v1725 = vsub.s32 0, %v1724
        %v1726 = vrot.slane %v1721, %v1725
        %v1728 = vadd.f32 %v1719, %v1726
        %v1729 = vadd.f32 %v1720, %v1726
        %v1730 = vld [vmem:[%s526] sm:$0x1]
        %v1732 = vlaneseq
        %v1733 = vshrl.u32 %v1732, 7
        %v1734 = vsub.s32 0, %v1733
        %v1735 = vrot.slane %v1730, %v1734
        %v1737 = vadd.f32 %v1728, %v1735
        %v1738 = vadd.f32 %v1729, %v1735
        %v1739 = vld [vmem:[%s11] sm:$0x1]
        %v1740 = vld [vmem:[%s12] sm:$0x1]
        %v1741 = vmul.u32 %v997, 8
        %vm1742 = vcmp.ge.s32.totalorder %v707, %v1741
        %vm1743 = vcmp.ge.s32.totalorder %v708, %v1741
        %vm1744 = vcmp.ge.s32.totalorder %v986, %v1741
        %vm1745 = vcmp.ge.s32.totalorder %v987, %v1741
        %vm1746 = vcmp.ge.s32.totalorder %v988, %v1741
        %vm1747 = vcmp.ge.s32.totalorder %v989, %v1741
        %vm1748 = vcmp.ge.s32.totalorder %v990, %v1741
        %vm1749 = vcmp.ge.s32.totalorder %v991, %v1741
        %v1750 = vmul.u32 %v1011, 8
        %vm1751 = vcmp.lt.s32.totalorder %v707, %v1750
        %vm1752 = vcmp.lt.s32.totalorder %v708, %v1750
        %vm1753 = vcmp.lt.s32.totalorder %v986, %v1750
        %vm1754 = vcmp.lt.s32.totalorder %v987, %v1750
        %vm1755 = vcmp.lt.s32.totalorder %v988, %v1750
        %vm1756 = vcmp.lt.s32.totalorder %v989, %v1750
        %vm1757 = vcmp.lt.s32.totalorder %v990, %v1750
        %vm1758 = vcmp.lt.s32.totalorder %v991, %v1750
        %vm1759 = vmand %vm1742, %vm1751
        %vm1760 = vmand %vm1743, %vm1752
        %vm1761 = vmand %vm1744, %vm1753
        %vm1762 = vmand %vm1745, %vm1754
        %vm1763 = vmand %vm1746, %vm1755
        %vm1764 = vmand %vm1747, %vm1756
        %vm1765 = vmand %vm1748, %vm1757
        %vm1766 = vmand %vm1749, %vm1758
        %v1767 = vsel %vm1759, 1, 0
        %v1768 = vsel %vm1760, 1, 0
        %v1769 = vsel %vm1761, 1, 0
        %v1770 = vsel %vm1762, 1, 0
        %v1771 = vsel %vm1763, 1, 0
        %v1772 = vsel %vm1764, 1, 0
        %v1773 = vsel %vm1765, 1, 0
        %v1774 = vsel %vm1766, 1, 0
        %v1775 = vcvt.s32.f32 %v1767
        %v1776 = vcvt.s32.f32 %v1768
        %v1777 = vcvt.s32.f32 %v1769
        %v1778 = vcvt.s32.f32 %v1770
        %v1779 = vcvt.s32.f32 %v1771
        %v1780 = vcvt.s32.f32 %v1772
        %v1781 = vcvt.s32.f32 %v1773
        %v1782 = vcvt.s32.f32 %v1774
        %v1783 = vmul.u32 %v707, 8
        %vm1784 = vcmp.ge.s32.totalorder %v997, %v1783
        %v1785 = vmul.u32 %v1063, 8
        %vm1786 = vcmp.lt.s32.totalorder %v997, %v1785
        %vm1787 = vmand %vm1784, %vm1786
        %v1788 = vsel %vm1787, 1, 0
        %v1789 = vcvt.s32.f32 %v1788
        %v1790 = vsel %vm569, %v1737, 0.0
        %v1791 = vsel %vm569, %v1738, 0.0
        %v1792 = vadd.f32 %v1790, %v1791
        %v1793 = vrot.slane %v1792, 4
        %v1794 = vadd.f32 %v1792, %v1793
        %v1795 = vrot.slane %v1794, 2
        %v1796 = vadd.f32 %v1794, %v1795
        %v1797 = vrot.slane %v1796, 1
        %v1798 = vadd.f32 %v1796, %v1797
        %v1800 = vsel %vm569, %v1798, 0
        %1802 = vmatprep.subr.mxu0 0.0
        %1803 = vmatpush1.msra.mxu0 0.0
        %1804 = vmatprep.subr.mxu0 0.0
        %1805 = vmatpush1.msra.mxu0 0.0
        %1806 = vmatprep.subr.mxu0 0.0
        %1807 = vmatpush1.msra.mxu0 0.0
        %1808 = vmatprep.subr.mxu0 0.0
        %1809 = vmatpush1.msra.mxu0 0.0
        %1810 = vmatprep.subr.mxu0 0.0
        %1811 = vmatpush1.msra.mxu0 0.0
        %1812 = vmatprep.subr.mxu0 0.0
        %1813 = vmatpush1.msra.mxu0 0.0
        %1814 = vmatprep.subr.mxu0 0.0
        %1815 = vmatpush1.msra.mxu0 0.0
        %1816 = vmatprep.subr.mxu0 0.0
        %1817 = vmatpush1.msra.mxu0 0.0
        %1818 = vmatprep.subr.mxu0 0.0
        %1819 = vmatpush1.msra.mxu0 %v1782
        %1820 = vmatprep.subr.mxu0 0.0
        %1821 = vmatpush1.msra.mxu0 %v1781
        %1822 = vmatprep.subr.mxu0 0.0
        %1823 = vmatpush1.msra.mxu0 %v1780
        %1824 = vmatprep.subr.mxu0 0.0
        %1825 = vmatpush1.msra.mxu0 %v1779
        %1826 = vmatprep.subr.mxu0 0.0
        %1827 = vmatpush1.msra.mxu0 %v1778
        %1828 = vmatprep.subr.mxu0 0.0
        %1829 = vmatpush1.msra.mxu0 %v1777
        %1830 = vmatprep.subr.mxu0 0.0
        %1831 = vmatpush1.msra.mxu0 %v1776
        %1832 = vmatprep.subr.mxu0 0.0
        %1833 = vmatpush1.msra.mxu0 %v1775
        %1834 = vmatprep.subr.mxu0 0.0
        %1835 = vmatpush2.msra.mxu0 0.0
        %1836 = vmatprep.subr.mxu0 0.0
        %1837 = vmatpush2.msra.mxu0 0.0
        %1838 = vmatprep.subr.mxu0 0.0
        %1839 = vmatpush2.msra.mxu0 0.0
        %1840 = vmatprep.subr.mxu0 0.0
        %1841 = vmatpush2.msra.mxu0 0.0
        %1842 = vmatprep.subr.mxu0 0.0
        %1843 = vmatpush2.msra.mxu0 0.0
        %1844 = vmatprep.subr.mxu0 0.0
        %1845 = vmatpush2.msra.mxu0 0.0
        %1846 = vmatprep.subr.mxu0 0.0
        %1847 = vmatpush2.msra.mxu0 0.0
        %1848 = vmatprep.subr.mxu0 0.0
        %1849 = vmatpush2.msra.mxu0 0.0
        %1850 = vmatprep.subr.mxu0 0.0
        %1851 = vmatpush2.msra.mxu0 0.0
        %1852 = vmatprep.subr.mxu0 0.0
        %1853 = vmatpush2.msra.mxu0 0.0
        %1854 = vmatprep.subr.mxu0 0.0
        %1855 = vmatpush2.msra.mxu0 0.0
        %1856 = vmatprep.subr.mxu0 0.0
        %1857 = vmatpush2.msra.mxu0 0.0
        %1858 = vmatprep.subr.mxu0 0.0
        %1859 = vmatpush2.msra.mxu0 0.0
        %1860 = vmatprep.subr.mxu0 0.0
        %1861 = vmatpush2.msra.mxu0 0.0
        %1862 = vmatprep.subr.mxu0 0.0
        %1863 = vmatpush2.msra.mxu0 0.0
        %1864 = vmatprep.subr.mxu0 0.0
        %1865 = vmatpush2.msra.mxu0 0.0
        %1866 = vmatprep.mubr.f32.mxu0 0.0
        %1867 = vmatmul.mubr.f32.gmra.mxu0 %v1800
        %v1868 = vpop.f32.mrf.mxu0
        %v1869 = vadd.f32 0.0, %v1868
        %v1870 = vpop.f32.mrf.mxu0
        %1871 = vdwg.mxu0
        %v1872 = vrcp.pop 128.0
        %v1873 = vmul.f32 %v1869, %v1872
        %v1875 = vsel %vm1153, %v1873, 0
        %1877 = vmatprep.subr.mxu0 0.0
        %1878 = vmatpush1.msra.mxu0 0.0
        %1879 = vmatprep.subr.mxu0 0.0
        %1880 = vmatpush1.msra.mxu0 0.0
        %1881 = vmatprep.subr.mxu0 0.0
        %1882 = vmatpush1.msra.mxu0 0.0
        %1883 = vmatprep.subr.mxu0 0.0
        %1884 = vmatpush1.msra.mxu0 0.0
        %1885 = vmatprep.subr.mxu0 0.0
        %1886 = vmatpush1.msra.mxu0 0.0
        %1887 = vmatprep.subr.mxu0 0.0
        %1888 = vmatpush1.msra.mxu0 0.0
        %1889 = vmatprep.subr.mxu0 0.0
        %1890 = vmatpush1.msra.mxu0 0.0
        %1891 = vmatprep.subr.mxu0 0.0
        %1892 = vmatpush1.msra.mxu0 0.0
        %1893 = vmatprep.subr.mxu0 0.0
        %1894 = vmatpush1.msra.mxu0 0.0
        %1895 = vmatprep.subr.mxu0 0.0
        %1896 = vmatpush1.msra.mxu0 0.0
        %1897 = vmatprep.subr.mxu0 0.0
        %1898 = vmatpush1.msra.mxu0 0.0
        %1899 = vmatprep.subr.mxu0 0.0
        %1900 = vmatpush1.msra.mxu0 0.0
        %1901 = vmatprep.subr.mxu0 0.0
        %1902 = vmatpush1.msra.mxu0 0.0
        %1903 = vmatprep.subr.mxu0 0.0
        %1904 = vmatpush1.msra.mxu0 0.0
        %1905 = vmatprep.subr.mxu0 0.0
        %1906 = vmatpush1.msra.mxu0 0.0
        %1907 = vmatprep.subr.mxu0 0.0
        %1908 = vmatpush1.msra.mxu0 %v1789
        %1909 = vmatprep.subr.mxu0 0.0
        %1910 = vmatpush2.msra.mxu0 0.0
        %1911 = vmatprep.subr.mxu0 0.0
        %1912 = vmatpush2.msra.mxu0 0.0
        %1913 = vmatprep.subr.mxu0 0.0
        %1914 = vmatpush2.msra.mxu0 0.0
        %1915 = vmatprep.subr.mxu0 0.0
        %1916 = vmatpush2.msra.mxu0 0.0
        %1917 = vmatprep.subr.mxu0 0.0
        %1918 = vmatpush2.msra.mxu0 0.0
        %1919 = vmatprep.subr.mxu0 0.0
        %1920 = vmatpush2.msra.mxu0 0.0
        %1921 = vmatprep.subr.mxu0 0.0
        %1922 = vmatpush2.msra.mxu0 0.0
        %1923 = vmatprep.subr.mxu0 0.0
        %1924 = vmatpush2.msra.mxu0 0.0
        %1925 = vmatprep.subr.mxu0 0.0
        %1926 = vmatpush2.msra.mxu0 0.0
        %1927 = vmatprep.subr.mxu0 0.0
        %1928 = vmatpush2.msra.mxu0 0.0
        %1929 = vmatprep.subr.mxu0 0.0
        %1930 = vmatpush2.msra.mxu0 0.0
        %1931 = vmatprep.subr.mxu0 0.0
        %1932 = vmatpush2.msra.mxu0 0.0
        %1933 = vmatprep.subr.mxu0 0.0
        %1934 = vmatpush2.msra.mxu0 0.0
        %1935 = vmatprep.subr.mxu0 0.0
        %1936 = vmatpush2.msra.mxu0 0.0
        %1937 = vmatprep.subr.mxu0 0.0
        %1938 = vmatpush2.msra.mxu0 0.0
        %1939 = vmatprep.subr.mxu0 0.0
        %1940 = vmatpush2.msra.mxu0 0.0
        %1941 = vmatprep.mubr.f32.mxu0 0.0
        %1942 = vmatmul.mubr.f32.gmra.mxu0 %v1875
        %v1943 = vpop.f32.mrf.mxu0
        %v1944 = vadd.f32 0.0, %v1943
        %v1945 = vpop.f32.mrf.mxu0
        %1946 = vdwg.mxu0
        %v1947 = vlaneseq
        %v1948 = vshrl.u32 %v1947, 7
        %v1949 = vsub.s32 0, %v1948
        %v1950 = vrot.slane %v1944, %v1949
        %v1951 = vsub.f32 %v1737, %v1950
        %v1952 = vsub.f32 %v1738, %v1950
        %v1953 = vmul.f32 %v1951, %v1951
        %v1954 = vmul.f32 %v1952, %v1952
        %v1955 = vsel %vm569, %v1953, 0.0
        %v1956 = vsel %vm569, %v1954, 0.0
        %v1957 = vadd.f32 %v1955, %v1956
        %v1958 = vrot.slane %v1957, 4
        %v1959 = vadd.f32 %v1957, %v1958
        %v1960 = vrot.slane %v1959, 2
        %v1961 = vadd.f32 %v1959, %v1960
        %v1962 = vrot.slane %v1961, 1
        %v1963 = vadd.f32 %v1961, %v1962
        %v1965 = vsel %vm569, %v1963, 0
        %1967 = vmatprep.subr.mxu0 0.0
        %1968 = vmatpush1.msra.mxu0 0.0
        %1969 = vmatprep.subr.mxu0 0.0
        %1970 = vmatpush1.msra.mxu0 0.0
        %1971 = vmatprep.subr.mxu0 0.0
        %1972 = vmatpush1.msra.mxu0 0.0
        %1973 = vmatprep.subr.mxu0 0.0
        %1974 = vmatpush1.msra.mxu0 0.0
        %1975 = vmatprep.subr.mxu0 0.0
        %1976 = vmatpush1.msra.mxu0 0.0
        %1977 = vmatprep.subr.mxu0 0.0
        %1978 = vmatpush1.msra.mxu0 0.0
        %1979 = vmatprep.subr.mxu0 0.0
        %1980 = vmatpush1.msra.mxu0 0.0
        %1981 = vmatprep.subr.mxu0 0.0
        %1982 = vmatpush1.msra.mxu0 0.0
        %1983 = vmatprep.subr.mxu0 0.0
        %1984 = vmatpush1.msra.mxu0 %v1782
        %1985 = vmatprep.subr.mxu0 0.0
        %1986 = vmatpush1.msra.mxu0 %v1781
        %1987 = vmatprep.subr.mxu0 0.0
        %1988 = vmatpush1.msra.mxu0 %v1780
        %1989 = vmatprep.subr.mxu0 0.0
        %1990 = vmatpush1.msra.mxu0 %v1779
        %1991 = vmatprep.subr.mxu0 0.0
        %1992 = vmatpush1.msra.mxu0 %v1778
        %1993 = vmatprep.subr.mxu0 0.0
        %1994 = vmatpush1.msra.mxu0 %v1777
        %1995 = vmatprep.subr.mxu0 0.0
        %1996 = vmatpush1.msra.mxu0 %v1776
        %1997 = vmatprep.subr.mxu0 0.0
        %1998 = vmatpush1.msra.mxu0 %v1775
        %1999 = vmatprep.subr.mxu0 0.0
        %2000 = vmatpush2.msra.mxu0 0.0
        %2001 = vmatprep.subr.mxu0 0.0
        %2002 = vmatpush2.msra.mxu0 0.0
        %2003 = vmatprep.subr.mxu0 0.0
        %2004 = vmatpush2.msra.mxu0 0.0
        %2005 = vmatprep.subr.mxu0 0.0
        %2006 = vmatpush2.msra.mxu0 0.0
        %2007 = vmatprep.subr.mxu0 0.0
        %2008 = vmatpush2.msra.mxu0 0.0
        %2009 = vmatprep.subr.mxu0 0.0
        %2010 = vmatpush2.msra.mxu0 0.0
        %2011 = vmatprep.subr.mxu0 0.0
        %2012 = vmatpush2.msra.mxu0 0.0
        %2013 = vmatprep.subr.mxu0 0.0
        %2014 = vmatpush2.msra.mxu0 0.0
        %2015 = vmatprep.subr.mxu0 0.0
        %2016 = vmatpush2.msra.mxu0 0.0
        %2017 = vmatprep.subr.mxu0 0.0
        %2018 = vmatpush2.msra.mxu0 0.0
        %2019 = vmatprep.subr.mxu0 0.0
        %2020 = vmatpush2.msra.mxu0 0.0
        %2021 = vmatprep.subr.mxu0 0.0
        %2022 = vmatpush2.msra.mxu0 0.0
        %2023 = vmatprep.subr.mxu0 0.0
        %2024 = vmatpush2.msra.mxu0 0.0
        %2025 = vmatprep.subr.mxu0 0.0
        %2026 = vmatpush2.msra.mxu0 0.0
        %2027 = vmatprep.subr.mxu0 0.0
        %2028 = vmatpush2.msra.mxu0 0.0
        %2029 = vmatprep.subr.mxu0 0.0
        %2030 = vmatpush2.msra.mxu0 0.0
        %2031 = vmatprep.mubr.f32.mxu0 0.0
        %2032 = vmatmul.mubr.f32.gmra.mxu0 %v1965
        %v2033 = vpop.f32.mrf.mxu0
        %v2034 = vadd.f32 0.0, %v2033
        %v2035 = vpop.f32.mrf.mxu0
        %2036 = vdwg.mxu0
        %v2037 = vmul.f32 %v2034, %v1872
        %v2038 = vadd.f32 %v2037, 1e-05
        %v2039 = vrsqrt.pop %v2038
        %v2041 = vsel %vm1153, %v2039, 0
        %2043 = vmatprep.subr.mxu0 0.0
        %2044 = vmatpush1.msra.mxu0 0.0
        %2045 = vmatprep.subr.mxu0 0.0
        %2046 = vmatpush1.msra.mxu0 0.0
        %2047 = vmatprep.subr.mxu0 0.0
        %2048 = vmatpush1.msra.mxu0 0.0
        %2049 = vmatprep.subr.mxu0 0.0
        %2050 = vmatpush1.msra.mxu0 0.0
        %2051 = vmatprep.subr.mxu0 0.0
        %2052 = vmatpush1.msra.mxu0 0.0
        %2053 = vmatprep.subr.mxu0 0.0
        %2054 = vmatpush1.msra.mxu0 0.0
        %2055 = vmatprep.subr.mxu0 0.0
        %2056 = vmatpush1.msra.mxu0 0.0
        %2057 = vmatprep.subr.mxu0 0.0
        %2058 = vmatpush1.msra.mxu0 0.0
        %2059 = vmatprep.subr.mxu0 0.0
        %2060 = vmatpush1.msra.mxu0 0.0
        %2061 = vmatprep.subr.mxu0 0.0
        %2062 = vmatpush1.msra.mxu0 0.0
        %2063 = vmatprep.subr.mxu0 0.0
        %2064 = vmatpush1.msra.mxu0 0.0
        %2065 = vmatprep.subr.mxu0 0.0
        %2066 = vmatpush1.msra.mxu0 0.0
        %2067 = vmatprep.subr.mxu0 0.0
        %2068 = vmatpush1.msra.mxu0 0.0
        %2069 = vmatprep.subr.mxu0 0.0
        %2070 = vmatpush1.msra.mxu0 0.0
        %2071 = vmatprep.subr.mxu0 0.0
        %2072 = vmatpush1.msra.mxu0 0.0
        %2073 = vmatprep.subr.mxu0 0.0
        %2074 = vmatpush1.msra.mxu0 %v1789
        %2075 = vmatprep.subr.mxu0 0.0
        %2076 = vmatpush2.msra.mxu0 0.0
        %2077 = vmatprep.subr.mxu0 0.0
        %2078 = vmatpush2.msra.mxu0 0.0
        %2079 = vmatprep.subr.mxu0 0.0
        %2080 = vmatpush2.msra.mxu0 0.0
        %2081 = vmatprep.subr.mxu0 0.0
        %2082 = vmatpush2.msra.mxu0 0.0
        %2083 = vmatprep.subr.mxu0 0.0
        %2084 = vmatpush2.msra.mxu0 0.0
        %2085 = vmatprep.subr.mxu0 0.0
        %2086 = vmatpush2.msra.mxu0 0.0
        %2087 = vmatprep.subr.mxu0 0.0
        %2088 = vmatpush2.msra.mxu0 0.0
        %2089 = vmatprep.subr.mxu0 0.0
        %2090 = vmatpush2.msra.mxu0 0.0
        %2091 = vmatprep.subr.mxu0 0.0
        %2092 = vmatpush2.msra.mxu0 0.0
        %2093 = vmatprep.subr.mxu0 0.0
        %2094 = vmatpush2.msra.mxu0 0.0
        %2095 = vmatprep.subr.mxu0 0.0
        %2096 = vmatpush2.msra.mxu0 0.0
        %2097 = vmatprep.subr.mxu0 0.0
        %2098 = vmatpush2.msra.mxu0 0.0
        %2099 = vmatprep.subr.mxu0 0.0
        %2100 = vmatpush2.msra.mxu0 0.0
        %2101 = vmatprep.subr.mxu0 0.0
        %2102 = vmatpush2.msra.mxu0 0.0
        %2103 = vmatprep.subr.mxu0 0.0
        %2104 = vmatpush2.msra.mxu0 0.0
        %2105 = vmatprep.subr.mxu0 0.0
        %2106 = vmatpush2.msra.mxu0 0.0
        %2107 = vmatprep.mubr.f32.mxu0 0.0
        %2108 = vmatmul.mubr.f32.gmra.mxu0 %v2041
        %v2109 = vpop.f32.mrf.mxu0
        %v2110 = vadd.f32 0.0, %v2109
        %v2111 = vpop.f32.mrf.mxu0
        %2112 = vdwg.mxu0
        %v2113 = vlaneseq
        %v2114 = vshrl.u32 %v2113, 7
        %v2115 = vsub.s32 0, %v2114
        %v2116 = vrot.slane %v2110, %v2115
        %v2117 = vmul.f32 %v1951, %v2116
        %v2118 = vmul.f32 %v1952, %v2116
        %v2120 = vlaneseq
        %v2121 = vshrl.u32 %v2120, 7
        %v2122 = vsub.s32 0, %v2121
        %v2123 = vrot.slane %v1739, %v2122
        %v2125 = vmul.f32 %v2117, %v2123
        %v2126 = vmul.f32 %v2118, %v2123
        %v2128 = vlaneseq
        %v2129 = vshrl.u32 %v2128, 7
        %v2130 = vsub.s32 0, %v2129
        %v2131 = vrot.slane %v1740, %v2130
        %v2133 = vadd.f32 %v2125, %v2131
        %v2134 = vadd.f32 %v2126, %v2131
        %v2135 = vxor.u32 %v2133, 2147483648
        %v2136 = vxor.u32 %v2134, 2147483648
        %v2137 = vmul.f32 %v2135, 1.442695
        %v2138 = vpow.pop %v2137
        %v2139 = vmul.f32 %v2136, 1.442695
        %v2140 = vpow.pop %v2139
        %v2141 = vadd.f32 %v2138, 1.0
        %v2142 = vadd.f32 %v2140, 1.0
        %v2143 = vrcp.pop %v2141
        %v2144 = vmul.f32 1.0, %v2143
        %v2145 = vrcp.pop %v2142
        %v2146 = vmul.f32 1.0, %v2145
        %v2147 = vmul.f32 %v2133, %v2144
        %v2148 = vmul.f32 %v2134, %v2146
        %v2149 = vpack.c.bf16 %v2148, %v2147
        %v2150 = vld [vmem:[%s13] sm:$0xf]
        %v2151 = vld [vmem:[%s13 + $0x4] sm:$0xf]
        %v2152 = vld [vmem:[%s13 + $0x8] sm:$0xf]
        %v2153 = vld [vmem:[%s13 + $0xc] sm:$0xf]
        %v2154 = vld [vmem:[%s13 + $0x10] sm:$0xf]
        %v2155 = vld [vmem:[%s13 + $0x14] sm:$0xf]
        %v2156 = vld [vmem:[%s13 + $0x18] sm:$0xf]
        %v2157 = vld [vmem:[%s13 + $0x1c] sm:$0xf]
        %v2166 = vunpack.c.l.b16 %v2150
        %v2167 = vunpack.c.l.b16 %v2151
        %v2168 = vunpack.c.l.b16 %v2152
        %v2169 = vunpack.c.l.b16 %v2153
        %v2170 = vunpack.c.l.b16 %v2154
        %v2171 = vunpack.c.l.b16 %v2155
        %v2172 = vunpack.c.l.b16 %v2156
        %v2173 = vunpack.c.l.b16 %v2157
        %v2174 = vpack.c.b16 %v2167, %v2166
        %v2175 = vpack.c.b16 %v2169, %v2168
        %v2176 = vpack.c.b16 %v2171, %v2170
        %v2177 = vpack.c.b16 %v2173, %v2172
        %v2183 = vsel %vm569, %v2149, 0
        %2185 = vmatprep.subr.bf16.mxu0 0
        %2186 = vmatpush1.bf16.msra.mxu0 0
        %2187 = vmatprep.subr.bf16.mxu0 0
        %2188 = vmatpush1.bf16.msra.mxu0 0
        %2189 = vmatprep.subr.bf16.mxu0 0
        %2190 = vmatpush1.bf16.msra.mxu0 0
        %2191 = vmatprep.subr.bf16.mxu0 0
        %2192 = vmatpush1.bf16.msra.mxu0 0
        %2193 = vmatprep.subr.bf16.mxu0 0
        %2194 = vmatpush1.bf16.msra.mxu0 %v2177
        %2195 = vmatprep.subr.bf16.mxu0 0
        %2196 = vmatpush1.bf16.msra.mxu0 %v2176
        %2197 = vmatprep.subr.bf16.mxu0 0
        %2198 = vmatpush1.bf16.msra.mxu0 %v2175
        %2199 = vmatprep.subr.bf16.mxu0 0
        %2200 = vmatpush1.bf16.msra.mxu0 %v2174
        %2201 = vmatprep.subr.bf16.mxu0 0
        %2202 = vmatpush2.bf16.msra.mxu0 0
        %2203 = vmatprep.subr.bf16.mxu0 0
        %2204 = vmatpush2.bf16.msra.mxu0 0
        %2205 = vmatprep.subr.bf16.mxu0 0
        %2206 = vmatpush2.bf16.msra.mxu0 0
        %2207 = vmatprep.subr.bf16.mxu0 0
        %2208 = vmatpush2.bf16.msra.mxu0 0
        %2209 = vmatprep.subr.bf16.mxu0 0
        %2210 = vmatpush2.bf16.msra.mxu0 0
        %2211 = vmatprep.subr.bf16.mxu0 0
        %2212 = vmatpush2.bf16.msra.mxu0 0
        %2213 = vmatprep.subr.bf16.mxu0 0
        %2214 = vmatpush2.bf16.msra.mxu0 0
        %2215 = vmatprep.subr.bf16.mxu0 0
        %2216 = vmatpush2.bf16.msra.mxu0 0
        %2217 = vmatprep.mubr.bf16.mxu0 0
        %2218 = vmatmul.mubr.bf16.gmra.mxu0 %v2183
        %v2219 = vpop.f32.mrf.mxu0
        %v2220 = vadd.f32 0.0, %v2219
        %v2221 = vpop.f32.mrf.mxu0
        %v2222 = vpop.f32.mrf.mxu0
        %v2223 = vadd.f32 0.0, %v2222
        %v2224 = vpop.f32.mrf.mxu0
        %2225 = vdwg.mxu0
        %s2226 = scalar_lea.vmem %s13, 32
        %v2227 = vld [vmem:[%s2226] sm:$0xf]
        %v2228 = vld [vmem:[%s2226 + $0x4] sm:$0xf]
        %v2229 = vld [vmem:[%s2226 + $0x8] sm:$0xf]
        %v2230 = vld [vmem:[%s2226 + $0xc] sm:$0xf]
        %v2231 = vld [vmem:[%s2226 + $0x10] sm:$0xf]
        %v2232 = vld [vmem:[%s2226 + $0x14] sm:$0xf]
        %v2233 = vld [vmem:[%s2226 + $0x18] sm:$0xf]
        %v2234 = vld [vmem:[%s2226 + $0x1c] sm:$0xf]
        %v2243 = vunpack.c.l.b16 %v2227
        %v2244 = vunpack.c.l.b16 %v2228
        %v2245 = vunpack.c.l.b16 %v2229
        %v2246 = vunpack.c.l.b16 %v2230
        %v2247 = vunpack.c.l.b16 %v2231
        %v2248 = vunpack.c.l.b16 %v2232
        %v2249 = vunpack.c.l.b16 %v2233
        %v2250 = vunpack.c.l.b16 %v2234
        %v2251 = vpack.c.b16 %v2244, %v2243
        %v2252 = vpack.c.b16 %v2246, %v2245
        %v2253 = vpack.c.b16 %v2248, %v2247
        %v2254 = vpack.c.b16 %v2250, %v2249
        %2259 = vmatprep.subr.bf16.mxu0 0
        %2260 = vmatpush1.bf16.msra.mxu0 0
        %2261 = vmatprep.subr.bf16.mxu0 0
        %2262 = vmatpush1.bf16.msra.mxu0 0
        %2263 = vmatprep.subr.bf16.mxu0 0
        %2264 = vmatpush1.bf16.msra.mxu0 0
        %2265 = vmatprep.subr.bf16.mxu0 0
        %2266 = vmatpush1.bf16.msra.mxu0 0
        %2267 = vmatprep.subr.bf16.mxu0 0
        %2268 = vmatpush1.bf16.msra.mxu0 %v2254
        %2269 = vmatprep.subr.bf16.mxu0 0
        %2270 = vmatpush1.bf16.msra.mxu0 %v2253
        %2271 = vmatprep.subr.bf16.mxu0 0
        %2272 = vmatpush1.bf16.msra.mxu0 %v2252
        %2273 = vmatprep.subr.bf16.mxu0 0
        %2274 = vmatpush1.bf16.msra.mxu0 %v2251
        %2275 = vmatprep.subr.bf16.mxu0 0
        %2276 = vmatpush2.bf16.msra.mxu0 0
        %2277 = vmatprep.subr.bf16.mxu0 0
        %2278 = vmatpush2.bf16.msra.mxu0 0
        %2279 = vmatprep.subr.bf16.mxu0 0
        %2280 = vmatpush2.bf16.msra.mxu0 0
        %2281 = vmatprep.subr.bf16.mxu0 0
        %2282 = vmatpush2.bf16.msra.mxu0 0
        %2283 = vmatprep.subr.bf16.mxu0 0
        %2284 = vmatpush2.bf16.msra.mxu0 0
        %2285 = vmatprep.subr.bf16.mxu0 0
        %2286 = vmatpush2.bf16.msra.mxu0 0
        %2287 = vmatprep.subr.bf16.mxu0 0
        %2288 = vmatpush2.bf16.msra.mxu0 0
        %2289 = vmatprep.subr.bf16.mxu0 0
        %2290 = vmatpush2.bf16.msra.mxu0 0
        %2291 = vmatprep.mubr.bf16.mxu0 0
        %2292 = vmatmul.mubr.bf16.gmra.mxu0 %v2183
        %v2293 = vpop.f32.mrf.mxu0
        %v2294 = vadd.f32 0.0, %v2293
        %v2295 = vpop.f32.mrf.mxu0
        %v2296 = vpop.f32.mrf.mxu0
        %v2297 = vadd.f32 0.0, %v2296
        %v2298 = vpop.f32.mrf.mxu0
        %2299 = vdwg.mxu0
        %s2300 = scalar_lea.vmem %s13, 64
        %v2301 = vld [vmem:[%s2300] sm:$0xf]
        %v2302 = vld [vmem:[%s2300 + $0x4] sm:$0xf]
        %v2303 = vld [vmem:[%s2300 + $0x8] sm:$0xf]
        %v2304 = vld [vmem:[%s2300 + $0xc] sm:$0xf]
        %v2305 = vld [vmem:[%s2300 + $0x10] sm:$0xf]
        %v2306 = vld [vmem:[%s2300 + $0x14] sm:$0xf]
        %v2307 = vld [vmem:[%s2300 + $0x18] sm:$0xf]
        %v2308 = vld [vmem:[%s2300 + $0x1c] sm:$0xf]
        %v2317 = vunpack.c.l.b16 %v2301
        %v2318 = vunpack.c.l.b16 %v2302
        %v2319 = vunpack.c.l.b16 %v2303
        %v2320 = vunpack.c.l.b16 %v2304
        %v2321 = vunpack.c.l.b16 %v2305
        %v2322 = vunpack.c.l.b16 %v2306
        %v2323 = vunpack.c.l.b16 %v2307
        %v2324 = vunpack.c.l.b16 %v2308
        %v2325 = vpack.c.b16 %v2318, %v2317
        %v2326 = vpack.c.b16 %v2320, %v2319
        %v2327 = vpack.c.b16 %v2322, %v2321
        %v2328 = vpack.c.b16 %v2324, %v2323
        %2333 = vmatprep.subr.bf16.mxu0 0
        %2334 = vmatpush1.bf16.msra.mxu0 0
        %2335 = vmatprep.subr.bf16.mxu0 0
        %2336 = vmatpush1.bf16.msra.mxu0 0
        %2337 = vmatprep.subr.bf16.mxu0 0
        %2338 = vmatpush1.bf16.msra.mxu0 0
        %2339 = vmatprep.subr.bf16.mxu0 0
        %2340 = vmatpush1.bf16.msra.mxu0 0
        %2341 = vmatprep.subr.bf16.mxu0 0
        %2342 = vmatpush1.bf16.msra.mxu0 %v2328
        %2343 = vmatprep.subr.bf16.mxu0 0
        %2344 = vmatpush1.bf16.msra.mxu0 %v2327
        %2345 = vmatprep.subr.bf16.mxu0 0
        %2346 = vmatpush1.bf16.msra.mxu0 %v2326
        %2347 = vmatprep.subr.bf16.mxu0 0
        %2348 = vmatpush1.bf16.msra.mxu0 %v2325
        %2349 = vmatprep.subr.bf16.mxu0 0
        %2350 = vmatpush2.bf16.msra.mxu0 0
        %2351 = vmatprep.subr.bf16.mxu0 0
        %2352 = vmatpush2.bf16.msra.mxu0 0
        %2353 = vmatprep.subr.bf16.mxu0 0
        %2354 = vmatpush2.bf16.msra.mxu0 0
        %2355 = vmatprep.subr.bf16.mxu0 0
        %2356 = vmatpush2.bf16.msra.mxu0 0
        %2357 = vmatprep.subr.bf16.mxu0 0
        %2358 = vmatpush2.bf16.msra.mxu0 0
        %2359 = vmatprep.subr.bf16.mxu0 0
        %2360 = vmatpush2.bf16.msra.mxu0 0
        %2361 = vmatprep.subr.bf16.mxu0 0
        %2362 = vmatpush2.bf16.msra.mxu0 0
        %2363 = vmatprep.subr.bf16.mxu0 0
        %2364 = vmatpush2.bf16.msra.mxu0 0
        %2365 = vmatprep.mubr.bf16.mxu0 0
        %2366 = vmatmul.mubr.bf16.gmra.mxu0 %v2183
        %v2367 = vpop.f32.mrf.mxu0
        %v2368 = vadd.f32 0.0, %v2367
        %v2369 = vpop.f32.mrf.mxu0
        %v2370 = vpop.f32.mrf.mxu0
        %v2371 = vadd.f32 0.0, %v2370
        %v2372 = vpop.f32.mrf.mxu0
        %2373 = vdwg.mxu0
        %v2374 = vrot.slane %v2220, 7
        %v2375 = vrot.slane %v2223, 7
        %v2376 = vsel %vm1706, %v2374, %v2375
        %v2377 = vsel %vm1706, %v2375, %v2374
        %v2378 = vsel %vm1702, %v2377, 0.0
        %v2379 = vsel %vm1703, %v2376, 0.0
        %v2380 = vrot.slane %v2368, 1
        %v2381 = vrot.slane %v2371, 1
        %v2382 = vsel %vm726, %v2380, %v2381
        %v2383 = vsel %vm726, %v2381, %v2380
        %v2384 = vsel %vm722, %v2382, 0.0
        %v2385 = vsel %vm723, %v2383, 0.0
        %v2386 = vadd.f32 %v2378, %v2294
        %v2387 = vadd.f32 %v2379, %v2297
        %v2388 = vadd.f32 %v2386, %v2384
        %v2389 = vadd.f32 %v2387, %v2385
        %v2390 = vld [vmem:[%s14] sm:$0x1]
        %v2392 = vlaneseq
        %v2393 = vshrl.u32 %v2392, 7
        %v2394 = vsub.s32 0, %v2393
        %v2395 = vrot.slane %v2390, %v2394
        %v2397 = vadd.f32 %v2388, %v2395
        %v2398 = vadd.f32 %v2389, %v2395
        %v2399 = vadd.f32 %v2397, %v978
        %v2400 = vadd.f32 %v2398, %v981
        %2401 = vst.msk [vmem:[%s513] sm:$0xff] %vm569, %v2399
        %2402 = vst.msk [vmem:[%s513 + $0x8] sm:$0xff] %vm569, %v2400
        %s2403 = sand.u32 %s367, 1
        %s2404 = scalar_lea.sflag [#allocation3], %s2403
        %s2405 = sand.u32 %s367, 1
        %s2406 = smul.addr %s2405, 16
        %s2407 = scalar_lea.vmem [#allocation2], %s2406
        // Predicated region
        $region81: #{upblock_forward.1} parent=79 // pred_check
          %p2408 = pneg %p377
        $region82: #{upblock_forward.1} parent=79 // pred_check_branch
          %2410 = sbr.rel (%p2408) target = $region84
        $region83: #{upblock_forward.1} parent=79 // pred_region
          %s2412 = ssub.s32 256, 256
          %2413 = vsyncadd %s2404, %s2412
          %s2414 = smul.addr %s29, 2
          %s2415 = smul.addr %s2414, 128
          %s2416 = scalar_lea.hbm %s15, %s2415
          %s2417 = sshll.u32 %s2407, 4
          %s2418 = int_to_ptr.vmem [resolvable:$true] %s2417
          %2423 = dma.vmem_to_hbm [thread:$0]  %s2418, 256, %s2416, %s2404, 128, 128, 8
        $region84: #{upblock_forward.1} parent=79 // pred_fallthru
          _
      $region80: #{upblock_forward.1} parent=5 // pred_fallthru
        _
      %p2424 = scmp.le.s32.totalorder 2, %s24
      // Predicated region
      $region85: #{upblock_forward.1} parent=5 // pred_check
        %p2425 = pneg %p2424
      $region86: #{upblock_forward.1} parent=5 // pred_check_branch
        %2427 = sbr.rel (%p2425) target = $region88
      $region87: #{upblock_forward.1} parent=5 // pred_region
        %s2428 = ssub.s32 %s24, 2
        // Predicated region
        $region89: #{upblock_forward.1} parent=87 // pred_check
          %p2429 = pneg %p383
        $region90: #{upblock_forward.1} parent=87 // pred_check_branch
          %2431 = sbr.rel (%p2429) target = $region92
        $region91: #{upblock_forward.1} parent=87 // pred_region
          %s2432 = sand.u32 %s368, 1
          %s2433 = scalar_lea.sflag [#allocation3], %s2432
          %s2434 = sand.u32 %s368, 1
          %s2435 = smul.addr %s2434, 16
          %s2436 = scalar_lea.vmem [#allocation2], %s2435
          %2437 = dma.done %s2433, 256
        $region92: #{upblock_forward.1} parent=87 // pred_fallthru
          _
      $region88: #{upblock_forward.1} parent=5 // pred_fallthru
        _
    $region6: #{upblock_forward.1} parent=1 // loop_footer
      %s28 = sadd.s32 1, %s24
    $region7: #{upblock_forward.1} parent=1 // loop_footer_branch
      %23 = sbr.rel target = $region3
    $region8: #{upblock_forward.1} parent=1 // loop_exit
      _
    %2438 = vsyncpa [#allocation3], 1
    %s2439 = scalar_lea.sflag [#allocation3], 1
    %2440 = vsyncpa %s2439, 1

</llo_original>
